<compile_context>
chip_gen: v5e
topology: v5e:2x2
jax: 0.10.0
libtpu: 0.0.40
codegen_flags: <defaults>
</compile_context>

<pallas_src>
import functools
import math

import jax
import jax.numpy as jnp
from jax.experimental import pallas as pl
from jax.experimental.pallas import tpu as pltpu

LN_EPS = 1e-5
MATMUL_DTYPE = jnp.bfloat16   # matmul operand dtype; accumulation is always f32


def _vmem_limit_bytes():
    """Generation-aware VMEM budget (~75% of capacity, capped at 100 MiB)."""
    cap = 64 * 1024 * 1024
    try:
        cap = int(getattr(pltpu.get_tpu_info(), "vmem_capacity_bytes", cap))
    except Exception:
        pass
    return min(cap * 3 // 4, 100 * 1024 * 1024)


def _layernorm_f32(z, g, b):
    mu = jnp.mean(z, axis=-1, keepdims=True)
    var = jnp.mean((z - mu) * (z - mu), axis=-1, keepdims=True)
    return (z - mu) * jax.lax.rsqrt(var + LN_EPS) * g + b


# ------------------------------ fused kernel --------------------------------

def _encoder_kernel(
    x_ref, pe_ref, win_ref, bin_ref, gin_ref, bein_ref,            # input stage
    wqkv_ref, bqkv_ref, wo_ref, bo_ref, g1_ref, be1_ref,           # attention block
    w1_ref, bf1_ref, w2_ref, bf2_ref, g2_ref, be2_ref,             # FFN block
    o_ref,                                                         # output (1, S, D)
    h_sc,                                                          # VMEM scratch (S, D) f32
    *, num_heads, d_model, compute_dtype):
    """Grid = (batch, layer). One step = one full encoder layer for one batch row."""
    layer = pl.program_id(1)
    cd = compute_dtype
    dk = d_model // num_heads
    q_scale = 1.0 / math.sqrt(dk)

    # ---- layer-0 prologue: input_proj Linear -> LayerNorm -> + pos_enc ------
    @pl.when(layer == 0)
    def _input_stage():
        y = jnp.dot(x_ref[0].astype(cd), win_ref[...],
                    preferred_element_type=jnp.float32) + bin_ref[...]
        h_sc[...] = _layernorm_f32(y, gin_ref[...], bein_ref[...]) + pe_ref[...]

    h = h_sc[...]                                                  # (S, D) f32

    # ---- multi-head self-attention (fused QKV, q pre-scaled) -----------------
    y = jnp.dot(h.astype(cd), wqkv_ref[0],
                preferred_element_type=jnp.float32) + bqkv_ref[0]  # (S, 3D)
    q = y[:, :d_model] * q_scale
    k = y[:, d_model:2 * d_model]
    v = y[:, 2 * d_model:3 * d_model]

    head_outs = []
    for hh in range(num_heads):                                    # static unroll
        sl = slice(hh * dk, (hh + 1) * dk)
        qh = q[:, sl].astype(cd)
        kh = k[:, sl].astype(cd)
        vh = v[:, sl].astype(cd)
        s = jnp.einsum("qd,kd->qk", qh, kh,
                       preferred_element_type=jnp.float32)         # (S, S)
        s = s - jnp.max(s, axis=-1, keepdims=True)
        p = jnp.exp(s)
        p = p / jnp.sum(p, axis=-1, keepdims=True)                 # exact softmax
        head_outs.append(jnp.dot(p.astype(cd), vh,
                                 preferred_element_type=jnp.float32))
    attn = jnp.concatenate(head_outs, axis=-1)                     # (S, D)

    # ---- output projection + residual + LayerNorm1 ---------------------------
    o1 = jnp.dot(attn.astype(cd), wo_ref[0],
                 preferred_element_type=jnp.float32) + bo_ref[0]
    z1 = _layernorm_f32(h + o1, g1_ref[0], be1_ref[0])

    # ---- FFN (relu) + residual + LayerNorm2 -----------------------------------
    ff = jnp.maximum(
        jnp.dot(z1.astype(cd), w1_ref[0],
                preferred_element_type=jnp.float32) + bf1_ref[0], 0.0)
    f2 = jnp.dot(ff.astype(cd), w2_ref[0],
                 preferred_element_type=jnp.float32) + bf2_ref[0]
    z2 = _layernorm_f32(z1 + f2, g2_ref[0], be2_ref[0])

    h_sc[...] = z2                                                 # carry to next layer

    @pl.when(layer == pl.num_programs(1) - 1)
    def _write_out():
        o_ref[0] = z2.astype(o_ref.dtype)


# -------------------------------- wrapper ------------------------------------

def positional_encoding(seq_len, d_model):
    pos = jnp.arange(seq_len, dtype=jnp.float32)[:, None]
    i = jnp.arange(d_model)[None, :]
    angle_rates = 1.0 / jnp.power(
        10000.0, (2.0 * (i // 2).astype(jnp.float32)) / float(d_model))
    angles = pos * angle_rates
    pe = jnp.where(i % 2 == 0, jnp.sin(angles), jnp.cos(angles))
    return pe.astype(jnp.float32)  # (seq_len, d_model)


def encoder_forward(params, x, num_heads):
    # TODO(synk): training-mode dropout and non-None attention mask are not
    #             implemented (eval / mask=None path only, matching the review).
    B, S, D = x.shape
    ip = params["in_proj"]
    st = params["stack"]
    L = st["wqkv"].shape[0]
    dff = st["w1"].shape[-1]
    pe = positional_encoding(S, D)

    kernel = functools.partial(_encoder_kernel, num_heads=num_heads,
                               d_model=D, compute_dtype=MATMUL_DTYPE)
    const2 = lambda b, l: (0, 0)          # shared (non-stacked) 2-D params
    per_layer = lambda b, l: (l, 0, 0)    # per-layer stacked params
    per_batch = lambda b, l: (b, 0, 0)    # activations (same block across layers)

    return pl.pallas_call(
        kernel,
        out_shape=jax.ShapeDtypeStruct((B, S, D), x.dtype),
        grid=(B, L),
        in_specs=[
            pl.BlockSpec((1, S, D), per_batch),          # x
            pl.BlockSpec((S, D), const2),                # positional encoding
            pl.BlockSpec((D, D), const2),                # input_proj weight
            pl.BlockSpec((1, D), const2),                # input_proj bias
            pl.BlockSpec((1, D), const2),                # input LN gamma
            pl.BlockSpec((1, D), const2),                # input LN beta
            pl.BlockSpec((1, D, 3 * D), per_layer),      # wqkv   (L, D, 3D)
            pl.BlockSpec((1, 1, 3 * D), per_layer),      # bqkv   (L, 1, 3D)
            pl.BlockSpec((1, D, D), per_layer),          # wo
            pl.BlockSpec((1, 1, D), per_layer),          # bo
            pl.BlockSpec((1, 1, D), per_layer),          # ln1 gamma
            pl.BlockSpec((1, 1, D), per_layer),          # ln1 beta
            pl.BlockSpec((1, D, dff), per_layer),        # w1
            pl.BlockSpec((1, 1, dff), per_layer),        # b1
            pl.BlockSpec((1, dff, D), per_layer),        # w2
            pl.BlockSpec((1, 1, D), per_layer),          # b2
            pl.BlockSpec((1, 1, D), per_layer),          # ln2 gamma
            pl.BlockSpec((1, 1, D), per_layer),          # ln2 beta
        ],
        out_specs=pl.BlockSpec((1, S, D), per_batch),
        scratch_shapes=[pltpu.VMEM((S, D), jnp.float32)],
        compiler_params=pltpu.CompilerParams(
            dimension_semantics=("parallel", "arbitrary"),
            vmem_limit_bytes=_vmem_limit_bytes()),
    )(x, pe,
      ip["w"], ip["b"], ip["ln_g"], ip["ln_b"],
      st["wqkv"], st["bqkv"], st["wo"], st["bo"], st["ln1_g"], st["ln1_b"],
      st["w1"], st["b1"], st["w2"], st["b2"], st["ln2_g"], st["ln2_b"])


# ------------------------------ param init -----------------------------------

def init_params(key, num_layers, d_model, num_heads, dff,
                matmul_dtype=MATMUL_DTYPE):
    def dense(key, fan_in, fan_out):
        kw, kb = jax.random.split(key)
        lim = 1.0 / math.sqrt(fan_in)
        w = jax.random.uniform(kw, (fan_in, fan_out), jnp.float32, -lim, lim)
        b = jax.random.uniform(kb, (fan_out,), jnp.float32, -lim, lim)
        return w, b

    keys = jax.random.split(key, 1 + num_layers)
    w, b = dense(keys[0], d_model, d_model)
    in_proj = {"w": w.astype(matmul_dtype),
               "b": b.reshape(1, d_model),
               "ln_g": jnp.ones((1, d_model), jnp.float32),
               "ln_b": jnp.zeros((1, d_model), jnp.float32)}

    wqkv, bqkv, wo, bo, w1, b1, w2, b2 = [], [], [], [], [], [], [], []
    for l in range(num_layers):
        lk = jax.random.split(keys[1 + l], 6)
        wq, bq_ = dense(lk[0], d_model, d_model)
        wk, bk_ = dense(lk[1], d_model, d_model)
        wv, bv_ = dense(lk[2], d_model, d_model)
        wo_, bo_ = dense(lk[3], d_model, d_model)
        w1_, b1_ = dense(lk[4], d_model, dff)
        w2_, b2_ = dense(lk[5], dff, d_model)
        wqkv.append(jnp.concatenate([wq, wk, wv], axis=1))
        bqkv.append(jnp.concatenate([bq_, bk_, bv_], axis=0))
        wo.append(wo_); bo.append(bo_)
        w1.append(w1_); b1.append(b1_)
        w2.append(w2_); b2.append(b2_)

    L = num_layers
    stack = {
        "wqkv": jnp.stack(wqkv).astype(matmul_dtype),          # (L, D, 3D)
        "bqkv": jnp.stack(bqkv).reshape(L, 1, 3 * d_model),    # (L, 1, 3D) f32
        "wo": jnp.stack(wo).astype(matmul_dtype),              # (L, D, D)
        "bo": jnp.stack(bo).reshape(L, 1, d_model),
        "ln1_g": jnp.ones((L, 1, d_model), jnp.float32),
        "ln1_b": jnp.zeros((L, 1, d_model), jnp.float32),
        "w1": jnp.stack(w1).astype(matmul_dtype),              # (L, D, dff)
        "b1": jnp.stack(b1).reshape(L, 1, dff),
        "w2": jnp.stack(w2).astype(matmul_dtype),              # (L, dff, D)
        "b2": jnp.stack(b2).reshape(L, 1, d_model),
        "ln2_g": jnp.ones((L, 1, d_model), jnp.float32),
        "ln2_b": jnp.zeros((L, 1, d_model), jnp.float32),
    }
    return {"in_proj": in_proj, "stack": stack}


# --------------------------------- main ---------------------------------------

if __name__ == "__main__":
    num_layers = 2
    d_model = 32
    num_heads = 4
    dff = 64
    batch = 2
    seq = 8

    key = jax.random.PRNGKey(0)
    kx, kp = jax.random.split(key)
    x = jax.random.normal(kx, (batch, seq, d_model), dtype=jnp.float32)
    params = init_params(kp, num_layers, d_model, num_heads, dff)

    fwd = jax.jit(functools.partial(encoder_forward, num_heads=num_heads))
    out = jax.block_until_ready(fwd(params, x))

    assert out.shape == (batch, seq, d_model)
    assert bool(jnp.all(jnp.isfinite(out)))
    print("KERNEL_OK")
</pallas_src>

<mosaic_0001>
module attributes {stable_mosaic.version = 11 : i64} {
  func.func @_encoder_kernel(%arg0: i32, %arg1: i32, %arg2: memref<1x8x32xf32, #tpu.memory_space<vmem>>, %arg3: memref<8x32xf32, #tpu.memory_space<vmem>>, %arg4: memref<32x32xbf16, #tpu.memory_space<vmem>>, %arg5: memref<1x32xf32, #tpu.memory_space<vmem>>, %arg6: memref<1x32xf32, #tpu.memory_space<vmem>>, %arg7: memref<1x32xf32, #tpu.memory_space<vmem>>, %arg8: memref<1x32x96xbf16, #tpu.memory_space<vmem>>, %arg9: memref<1x1x96xf32, #tpu.memory_space<vmem>>, %arg10: memref<1x32x32xbf16, #tpu.memory_space<vmem>>, %arg11: memref<1x1x32xf32, #tpu.memory_space<vmem>>, %arg12: memref<1x1x32xf32, #tpu.memory_space<vmem>>, %arg13: memref<1x1x32xf32, #tpu.memory_space<vmem>>, %arg14: memref<1x32x64xbf16, #tpu.memory_space<vmem>>, %arg15: memref<1x1x64xf32, #tpu.memory_space<vmem>>, %arg16: memref<1x64x32xbf16, #tpu.memory_space<vmem>>, %arg17: memref<1x1x32xf32, #tpu.memory_space<vmem>>, %arg18: memref<1x1x32xf32, #tpu.memory_space<vmem>>, %arg19: memref<1x1x32xf32, #tpu.memory_space<vmem>>, %arg20: memref<1x8x32xf32, #tpu.memory_space<vmem>>, %arg21: memref<8x32xf32, #tpu.memory_space<vmem>>) attributes {dimension_semantics = [#tpu.dimension_semantics<parallel>, #tpu.dimension_semantics<arbitrary>], iteration_bounds = array<i64: 2, 2>, scalar_prefetch = 0 : i64, scratch_operands = 1 : i64, tpu.core_type = #tpu.core_type<tc>, window_params = [{transform_indices = @transform_0, window_bounds = array<i64: 1, 8, 32>}, {pipeline_mode = #tpu.pipeline_mode<synchronous>, transform_indices = @transform_1, window_bounds = array<i64: 8, 32>}, {pipeline_mode = #tpu.pipeline_mode<synchronous>, transform_indices = @transform_2, window_bounds = array<i64: 32, 32>}, {pipeline_mode = #tpu.pipeline_mode<synchronous>, transform_indices = @transform_3, window_bounds = array<i64: 1, 32>}, {pipeline_mode = #tpu.pipeline_mode<synchronous>, transform_indices = @transform_4, window_bounds = array<i64: 1, 32>}, {pipeline_mode = #tpu.pipeline_mode<synchronous>, transform_indices = @transform_5, window_bounds = array<i64: 1, 32>}, {transform_indices = @transform_6, window_bounds = array<i64: 1, 32, 96>}, {transform_indices = @transform_7, window_bounds = array<i64: 1, 1, 96>}, {transform_indices = @transform_8, window_bounds = array<i64: 1, 32, 32>}, {transform_indices = @transform_9, window_bounds = array<i64: 1, 1, 32>}, {transform_indices = @transform_10, window_bounds = array<i64: 1, 1, 32>}, {transform_indices = @transform_11, window_bounds = array<i64: 1, 1, 32>}, {transform_indices = @transform_12, window_bounds = array<i64: 1, 32, 64>}, {transform_indices = @transform_13, window_bounds = array<i64: 1, 1, 64>}, {transform_indices = @transform_14, window_bounds = array<i64: 1, 64, 32>}, {transform_indices = @transform_15, window_bounds = array<i64: 1, 1, 32>}, {transform_indices = @transform_16, window_bounds = array<i64: 1, 1, 32>}, {transform_indices = @transform_17, window_bounds = array<i64: 1, 1, 32>}, {transform_indices = @transform_18, window_bounds = array<i64: 1, 8, 32>}]} {
    %c0_i32 = arith.constant 0 : i32
    %0 = arith.cmpi eq, %arg1, %c0_i32 : i32
    %1 = arith.extui %0 : i1 to i32
    %c0_i32_0 = arith.constant 0 : i32
    %2 = arith.cmpi ne, %1, %c0_i32_0 : i32
    scf.if %2 {
      %c0_72 = arith.constant 0 : index
      %c0_73 = arith.constant 0 : index
      %c0_74 = arith.constant 0 : index
      %178 = vector.load %arg2[%c0_72, %c0_73, %c0_74] : memref<1x8x32xf32, #tpu.memory_space<vmem>>, vector<1x8x32xf32>
      %179 = vector.shape_cast %178 : vector<1x8x32xf32> to vector<8x32xf32>
      %180 = arith.truncf %179 : vector<8x32xf32> to vector<8x32xbf16>
      %c0_75 = arith.constant 0 : index
      %c0_76 = arith.constant 0 : index
      %181 = vector.load %arg4[%c0_75, %c0_76] : memref<32x32xbf16, #tpu.memory_space<vmem>>, vector<32x32xbf16>
      %cst_77 = arith.constant dense<0.000000e+00> : vector<8x32xf32>
      %182 = tpu.matmul %180, %181, %cst_77 {dimension_numbers = #tpu.dot_dimension_numbers<[1], [0], [0], [1], [0, 0, 1, 1], [], []>} : vector<8x32xbf16>, vector<32x32xbf16>, vector<8x32xf32> -> vector<8x32xf32>
      %c0_78 = arith.constant 0 : index
      %c0_79 = arith.constant 0 : index
      %183 = vector.load %arg5[%c0_78, %c0_79] : memref<1x32xf32, #tpu.memory_space<vmem>>, vector<1x32xf32>
      %184 = vector.broadcast %183 : vector<1x32xf32> to vector<8x32xf32>
      %185 = arith.addf %182, %184 : vector<8x32xf32>
      %c0_80 = arith.constant 0 : index
      %c0_81 = arith.constant 0 : index
      %186 = vector.load %arg6[%c0_80, %c0_81] : memref<1x32xf32, #tpu.memory_space<vmem>>, vector<1x32xf32>
      %c0_82 = arith.constant 0 : index
      %c0_83 = arith.constant 0 : index
      %187 = vector.load %arg7[%c0_82, %c0_83] : memref<1x32xf32, #tpu.memory_space<vmem>>, vector<1x32xf32>
      %cst_84 = arith.constant dense<0.000000e+00> : vector<8xf32>
      %188 = vector.multi_reduction <add>, %185, %cst_84 [1] : vector<8x32xf32> to vector<8xf32>
      %189 = vector.shape_cast %188 : vector<8xf32> to vector<8x1xf32>
      %cst_85 = arith.constant 3.200000e+01 : f32
      %190 = vector.broadcast %cst_85 : f32 to vector<8x1xf32>
      %191 = arith.divf %189, %190 : vector<8x1xf32>
      %192 = vector.broadcast %191 : vector<8x1xf32> to vector<8x32xf32>
      %193 = arith.subf %185, %192 : vector<8x32xf32>
      %194 = vector.broadcast %191 : vector<8x1xf32> to vector<8x32xf32>
      %195 = arith.subf %185, %194 : vector<8x32xf32>
      %196 = arith.mulf %193, %195 : vector<8x32xf32>
      %cst_86 = arith.constant dense<0.000000e+00> : vector<8xf32>
      %197 = vector.multi_reduction <add>, %196, %cst_86 [1] : vector<8x32xf32> to vector<8xf32>
      %198 = vector.shape_cast %197 : vector<8xf32> to vector<8x1xf32>
      %cst_87 = arith.constant 3.200000e+01 : f32
      %199 = vector.broadcast %cst_87 : f32 to vector<8x1xf32>
      %200 = arith.divf %198, %199 : vector<8x1xf32>
      %201 = vector.broadcast %191 : vector<8x1xf32> to vector<8x32xf32>
      %202 = arith.subf %185, %201 : vector<8x32xf32>
      %cst_88 = arith.constant 9.99999974E-6 : f32
      %203 = vector.broadcast %cst_88 : f32 to vector<8x1xf32>
      %204 = arith.addf %200, %203 : vector<8x1xf32>
      %205 = math.rsqrt %204 : vector<8x1xf32>
      %206 = vector.broadcast %205 : vector<8x1xf32> to vector<8x32xf32>
      %207 = arith.mulf %202, %206 : vector<8x32xf32>
      %208 = vector.broadcast %186 : vector<1x32xf32> to vector<8x32xf32>
      %209 = arith.mulf %207, %208 : vector<8x32xf32>
      %210 = vector.broadcast %187 : vector<1x32xf32> to vector<8x32xf32>
      %211 = arith.addf %209, %210 : vector<8x32xf32>
      %c0_89 = arith.constant 0 : index
      %c0_90 = arith.constant 0 : index
      %212 = vector.load %arg3[%c0_89, %c0_90] : memref<8x32xf32, #tpu.memory_space<vmem>>, vector<8x32xf32>
      %213 = arith.addf %211, %212 : vector<8x32xf32>
      %c0_91 = arith.constant 0 : index
      %c0_92 = arith.constant 0 : index
      %214 = vector.load %arg21[%c0_91, %c0_92] : memref<8x32xf32, #tpu.memory_space<vmem>>, vector<8x32xf32>
      tpu.vector_store %arg21[%c0_91, %c0_92], %213 {strides = array<i32>} : memref<8x32xf32, #tpu.memory_space<vmem>>, vector<8x32xf32>,
    } else {
    }
    %c0 = arith.constant 0 : index
    %c0_1 = arith.constant 0 : index
    %3 = vector.load %arg21[%c0, %c0_1] : memref<8x32xf32, #tpu.memory_space<vmem>>, vector<8x32xf32>
    %4 = arith.truncf %3 : vector<8x32xf32> to vector<8x32xbf16>
    %c0_2 = arith.constant 0 : index
    %c0_3 = arith.constant 0 : index
    %c0_4 = arith.constant 0 : index
    %5 = vector.load %arg8[%c0_2, %c0_3, %c0_4] : memref<1x32x96xbf16, #tpu.memory_space<vmem>>, vector<1x32x96xbf16>
    %6 = vector.shape_cast %5 : vector<1x32x96xbf16> to vector<32x96xbf16>
    %cst = arith.constant dense<0.000000e+00> : vector<8x96xf32>
    %7 = tpu.matmul %4, %6, %cst {dimension_numbers = #tpu.dot_dimension_numbers<[1], [0], [0], [1], [0, 0, 1, 1], [], []>} : vector<8x32xbf16>, vector<32x96xbf16>, vector<8x96xf32> -> vector<8x96xf32>
    %c0_5 = arith.constant 0 : index
    %c0_6 = arith.constant 0 : index
    %c0_7 = arith.constant 0 : index
    %8 = vector.load %arg9[%c0_5, %c0_6, %c0_7] : memref<1x1x96xf32, #tpu.memory_space<vmem>>, vector<1x1x96xf32>
    %9 = vector.shape_cast %8 : vector<1x1x96xf32> to vector<1x96xf32>
    %10 = vector.broadcast %9 : vector<1x96xf32> to vector<8x96xf32>
    %11 = arith.addf %7, %10 : vector<8x96xf32>
    %12 = vector.extract_strided_slice %11 {offsets = [0, 0], sizes = [8, 32], strides = [1, 1]} : vector<8x96xf32> to vector<8x32xf32>
    %cst_8 = arith.constant 0.353553385 : f32
    %13 = vector.broadcast %cst_8 : f32 to vector<8x32xf32>
    %14 = arith.mulf %12, %13 : vector<8x32xf32>
    %15 = vector.extract_strided_slice %11 {offsets = [0, 32], sizes = [8, 32], strides = [1, 1]} : vector<8x96xf32> to vector<8x32xf32>
    %16 = vector.extract_strided_slice %11 {offsets = [0, 64], sizes = [8, 32], strides = [1, 1]} : vector<8x96xf32> to vector<8x32xf32>
    %17 = vector.extract_strided_slice %14 {offsets = [0, 0], sizes = [8, 8], strides = [1, 1]} : vector<8x32xf32> to vector<8x8xf32>
    %18 = arith.truncf %17 : vector<8x8xf32> to vector<8x8xbf16>
    %19 = vector.extract_strided_slice %15 {offsets = [0, 0], sizes = [8, 8], strides = [1, 1]} : vector<8x32xf32> to vector<8x8xf32>
    %20 = arith.truncf %19 : vector<8x8xf32> to vector<8x8xbf16>
    %21 = vector.extract_strided_slice %16 {offsets = [0, 0], sizes = [8, 8], strides = [1, 1]} : vector<8x32xf32> to vector<8x8xf32>
    %22 = arith.truncf %21 : vector<8x8xf32> to vector<8x8xbf16>
    "tpu.trace_start"() <{level = 10 : i32, message = "qd,kd->qk"}> : () -> ()
    %cst_9 = arith.constant dense<0.000000e+00> : vector<8x8xf32>
    %23 = tpu.matmul %18, %20, %cst_9 {dimension_numbers = #tpu.dot_dimension_numbers<[1], [1], [0], [0], [0, 0, 1, 0], [], []>} : vector<8x8xbf16>, vector<8x8xbf16>, vector<8x8xf32> -> vector<8x8xf32>
    "tpu.trace_stop"() : () -> ()
    %cst_10 = arith.constant dense<0xFF800000> : vector<8xf32>
    %24 = vector.multi_reduction <maximumf>, %23, %cst_10 [1] : vector<8x8xf32> to vector<8xf32>
    %25 = vector.shape_cast %24 : vector<8xf32> to vector<8x1xf32>
    %26 = vector.broadcast %25 : vector<8x1xf32> to vector<8x8xf32>
    %27 = arith.subf %23, %26 : vector<8x8xf32>
    %28 = math.exp %27 : vector<8x8xf32>
    %cst_11 = arith.constant dense<0.000000e+00> : vector<8xf32>
    %29 = vector.multi_reduction <add>, %28, %cst_11 [1] : vector<8x8xf32> to vector<8xf32>
    %30 = vector.shape_cast %29 : vector<8xf32> to vector<8x1xf32>
    %31 = vector.broadcast %30 : vector<8x1xf32> to vector<8x8xf32>
    %32 = arith.divf %28, %31 : vector<8x8xf32>
    %33 = arith.truncf %32 : vector<8x8xf32> to vector<8x8xbf16>
    %cst_12 = arith.constant dense<0.000000e+00> : vector<8x8xf32>
    %34 = tpu.matmul %33, %22, %cst_12 {dimension_numbers = #tpu.dot_dimension_numbers<[1], [0], [0], [1], [0, 0, 1, 1], [], []>} : vector<8x8xbf16>, vector<8x8xbf16>, vector<8x8xf32> -> vector<8x8xf32>
    %35 = vector.extract_strided_slice %14 {offsets = [0, 8], sizes = [8, 8], strides = [1, 1]} : vector<8x32xf32> to vector<8x8xf32>
    %36 = arith.truncf %35 : vector<8x8xf32> to vector<8x8xbf16>
    %37 = vector.extract_strided_slice %15 {offsets = [0, 8], sizes = [8, 8], strides = [1, 1]} : vector<8x32xf32> to vector<8x8xf32>
    %38 = arith.truncf %37 : vector<8x8xf32> to vector<8x8xbf16>
    %39 = vector.extract_strided_slice %16 {offsets = [0, 8], sizes = [8, 8], strides = [1, 1]} : vector<8x32xf32> to vector<8x8xf32>
    %40 = arith.truncf %39 : vector<8x8xf32> to vector<8x8xbf16>
    "tpu.trace_start"() <{level = 10 : i32, message = "qd,kd->qk"}> : () -> ()
    %cst_13 = arith.constant dense<0.000000e+00> : vector<8x8xf32>
    %41 = tpu.matmul %36, %38, %cst_13 {dimension_numbers = #tpu.dot_dimension_numbers<[1], [1], [0], [0], [0, 0, 1, 0], [], []>} : vector<8x8xbf16>, vector<8x8xbf16>, vector<8x8xf32> -> vector<8x8xf32>
    "tpu.trace_stop"() : () -> ()
    %cst_14 = arith.constant dense<0xFF800000> : vector<8xf32>
    %42 = vector.multi_reduction <maximumf>, %41, %cst_14 [1] : vector<8x8xf32> to vector<8xf32>
    %43 = vector.shape_cast %42 : vector<8xf32> to vector<8x1xf32>
    %44 = vector.broadcast %43 : vector<8x1xf32> to vector<8x8xf32>
    %45 = arith.subf %41, %44 : vector<8x8xf32>
    %46 = math.exp %45 : vector<8x8xf32>
    %cst_15 = arith.constant dense<0.000000e+00> : vector<8xf32>
    %47 = vector.multi_reduction <add>, %46, %cst_15 [1] : vector<8x8xf32> to vector<8xf32>
    %48 = vector.shape_cast %47 : vector<8xf32> to vector<8x1xf32>
    %49 = vector.broadcast %48 : vector<8x1xf32> to vector<8x8xf32>
    %50 = arith.divf %46, %49 : vector<8x8xf32>
    %51 = arith.truncf %50 : vector<8x8xf32> to vector<8x8xbf16>
    %cst_16 = arith.constant dense<0.000000e+00> : vector<8x8xf32>
    %52 = tpu.matmul %51, %40, %cst_16 {dimension_numbers = #tpu.dot_dimension_numbers<[1], [0], [0], [1], [0, 0, 1, 1], [], []>} : vector<8x8xbf16>, vector<8x8xbf16>, vector<8x8xf32> -> vector<8x8xf32>
    %53 = vector.extract_strided_slice %14 {offsets = [0, 16], sizes = [8, 8], strides = [1, 1]} : vector<8x32xf32> to vector<8x8xf32>
    %54 = arith.truncf %53 : vector<8x8xf32> to vector<8x8xbf16>
    %55 = vector.extract_strided_slice %15 {offsets = [0, 16], sizes = [8, 8], strides = [1, 1]} : vector<8x32xf32> to vector<8x8xf32>
    %56 = arith.truncf %55 : vector<8x8xf32> to vector<8x8xbf16>
    %57 = vector.extract_strided_slice %16 {offsets = [0, 16], sizes = [8, 8], strides = [1, 1]} : vector<8x32xf32> to vector<8x8xf32>
    %58 = arith.truncf %57 : vector<8x8xf32> to vector<8x8xbf16>
    "tpu.trace_start"() <{level = 10 : i32, message = "qd,kd->qk"}> : () -> ()
    %cst_17 = arith.constant dense<0.000000e+00> : vector<8x8xf32>
    %59 = tpu.matmul %54, %56, %cst_17 {dimension_numbers = #tpu.dot_dimension_numbers<[1], [1], [0], [0], [0, 0, 1, 0], [], []>} : vector<8x8xbf16>, vector<8x8xbf16>, vector<8x8xf32> -> vector<8x8xf32>
    "tpu.trace_stop"() : () -> ()
    %cst_18 = arith.constant dense<0xFF800000> : vector<8xf32>
    %60 = vector.multi_reduction <maximumf>, %59, %cst_18 [1] : vector<8x8xf32> to vector<8xf32>
    %61 = vector.shape_cast %60 : vector<8xf32> to vector<8x1xf32>
    %62 = vector.broadcast %61 : vector<8x1xf32> to vector<8x8xf32>
    %63 = arith.subf %59, %62 : vector<8x8xf32>
    %64 = math.exp %63 : vector<8x8xf32>
    %cst_19 = arith.constant dense<0.000000e+00> : vector<8xf32>
    %65 = vector.multi_reduction <add>, %64, %cst_19 [1] : vector<8x8xf32> to vector<8xf32>
    %66 = vector.shape_cast %65 : vector<8xf32> to vector<8x1xf32>
    %67 = vector.broadcast %66 : vector<8x1xf32> to vector<8x8xf32>
    %68 = arith.divf %64, %67 : vector<8x8xf32>
    %69 = arith.truncf %68 : vector<8x8xf32> to vector<8x8xbf16>
    %cst_20 = arith.constant dense<0.000000e+00> : vector<8x8xf32>
    %70 = tpu.matmul %69, %58, %cst_20 {dimension_numbers = #tpu.dot_dimension_numbers<[1], [0], [0], [1], [0, 0, 1, 1], [], []>} : vector<8x8xbf16>, vector<8x8xbf16>, vector<8x8xf32> -> vector<8x8xf32>
    %71 = vector.extract_strided_slice %14 {offsets = [0, 24], sizes = [8, 8], strides = [1, 1]} : vector<8x32xf32> to vector<8x8xf32>
    %72 = arith.truncf %71 : vector<8x8xf32> to vector<8x8xbf16>
    %73 = vector.extract_strided_slice %15 {offsets = [0, 24], sizes = [8, 8], strides = [1, 1]} : vector<8x32xf32> to vector<8x8xf32>
    %74 = arith.truncf %73 : vector<8x8xf32> to vector<8x8xbf16>
    %75 = vector.extract_strided_slice %16 {offsets = [0, 24], sizes = [8, 8], strides = [1, 1]} : vector<8x32xf32> to vector<8x8xf32>
    %76 = arith.truncf %75 : vector<8x8xf32> to vector<8x8xbf16>
    "tpu.trace_start"() <{level = 10 : i32, message = "qd,kd->qk"}> : () -> ()
    %cst_21 = arith.constant dense<0.000000e+00> : vector<8x8xf32>
    %77 = tpu.matmul %72, %74, %cst_21 {dimension_numbers = #tpu.dot_dimension_numbers<[1], [1], [0], [0], [0, 0, 1, 0], [], []>} : vector<8x8xbf16>, vector<8x8xbf16>, vector<8x8xf32> -> vector<8x8xf32>
    "tpu.trace_stop"() : () -> ()
    %cst_22 = arith.constant dense<0xFF800000> : vector<8xf32>
    %78 = vector.multi_reduction <maximumf>, %77, %cst_22 [1] : vector<8x8xf32> to vector<8xf32>
    %79 = vector.shape_cast %78 : vector<8xf32> to vector<8x1xf32>
    %80 = vector.broadcast %79 : vector<8x1xf32> to vector<8x8xf32>
    %81 = arith.subf %77, %80 : vector<8x8xf32>
    %82 = math.exp %81 : vector<8x8xf32>
    %cst_23 = arith.constant dense<0.000000e+00> : vector<8xf32>
    %83 = vector.multi_reduction <add>, %82, %cst_23 [1] : vector<8x8xf32> to vector<8xf32>
    %84 = vector.shape_cast %83 : vector<8xf32> to vector<8x1xf32>
    %85 = vector.broadcast %84 : vector<8x1xf32> to vector<8x8xf32>
    %86 = arith.divf %82, %85 : vector<8x8xf32>
    %87 = arith.truncf %86 : vector<8x8xf32> to vector<8x8xbf16>
    %cst_24 = arith.constant dense<0.000000e+00> : vector<8x8xf32>
    %88 = tpu.matmul %87, %76, %cst_24 {dimension_numbers = #tpu.dot_dimension_numbers<[1], [0], [0], [1], [0, 0, 1, 1], [], []>} : vector<8x8xbf16>, vector<8x8xbf16>, vector<8x8xf32> -> vector<8x8xf32>
    %89 = tpu.concatenate %34, %52, %70, %88 in 1 : vector<8x8xf32>, vector<8x8xf32>, vector<8x8xf32>, vector<8x8xf32> -> vector<8x32xf32>
    %90 = arith.truncf %89 : vector<8x32xf32> to vector<8x32xbf16>
    %c0_25 = arith.constant 0 : index
    %c0_26 = arith.constant 0 : index
    %c0_27 = arith.constant 0 : index
    %91 = vector.load %arg10[%c0_25, %c0_26, %c0_27] : memref<1x32x32xbf16, #tpu.memory_space<vmem>>, vector<1x32x32xbf16>
    %92 = vector.shape_cast %91 : vector<1x32x32xbf16> to vector<32x32xbf16>
    %cst_28 = arith.constant dense<0.000000e+00> : vector<8x32xf32>
    %93 = tpu.matmul %90, %92, %cst_28 {dimension_numbers = #tpu.dot_dimension_numbers<[1], [0], [0], [1], [0, 0, 1, 1], [], []>} : vector<8x32xbf16>, vector<32x32xbf16>, vector<8x32xf32> -> vector<8x32xf32>
    %c0_29 = arith.constant 0 : index
    %c0_30 = arith.constant 0 : index
    %c0_31 = arith.constant 0 : index
    %94 = vector.load %arg11[%c0_29, %c0_30, %c0_31] : memref<1x1x32xf32, #tpu.memory_space<vmem>>, vector<1x1x32xf32>
    %95 = vector.shape_cast %94 : vector<1x1x32xf32> to vector<1x32xf32>
    %96 = vector.broadcast %95 : vector<1x32xf32> to vector<8x32xf32>
    %97 = arith.addf %93, %96 : vector<8x32xf32>
    %98 = arith.addf %3, %97 : vector<8x32xf32>
    %c0_32 = arith.constant 0 : index
    %c0_33 = arith.constant 0 : index
    %c0_34 = arith.constant 0 : index
    %99 = vector.load %arg12[%c0_32, %c0_33, %c0_34] : memref<1x1x32xf32, #tpu.memory_space<vmem>>, vector<1x1x32xf32>
    %100 = vector.shape_cast %99 : vector<1x1x32xf32> to vector<1x32xf32>
    %c0_35 = arith.constant 0 : index
    %c0_36 = arith.constant 0 : index
    %c0_37 = arith.constant 0 : index
    %101 = vector.load %arg13[%c0_35, %c0_36, %c0_37] : memref<1x1x32xf32, #tpu.memory_space<vmem>>, vector<1x1x32xf32>
    %102 = vector.shape_cast %101 : vector<1x1x32xf32> to vector<1x32xf32>
    %cst_38 = arith.constant dense<0.000000e+00> : vector<8xf32>
    %103 = vector.multi_reduction <add>, %98, %cst_38 [1] : vector<8x32xf32> to vector<8xf32>
    %104 = vector.shape_cast %103 : vector<8xf32> to vector<8x1xf32>
    %cst_39 = arith.constant 3.200000e+01 : f32
    %105 = vector.broadcast %cst_39 : f32 to vector<8x1xf32>
    %106 = arith.divf %104, %105 : vector<8x1xf32>
    %107 = vector.broadcast %106 : vector<8x1xf32> to vector<8x32xf32>
    %108 = arith.subf %98, %107 : vector<8x32xf32>
    %109 = vector.broadcast %106 : vector<8x1xf32> to vector<8x32xf32>
    %110 = arith.subf %98, %109 : vector<8x32xf32>
    %111 = arith.mulf %108, %110 : vector<8x32xf32>
    %cst_40 = arith.constant dense<0.000000e+00> : vector<8xf32>
    %112 = vector.multi_reduction <add>, %111, %cst_40 [1] : vector<8x32xf32> to vector<8xf32>
    %113 = vector.shape_cast %112 : vector<8xf32> to vector<8x1xf32>
    %cst_41 = arith.constant 3.200000e+01 : f32
    %114 = vector.broadcast %cst_41 : f32 to vector<8x1xf32>
    %115 = arith.divf %113, %114 : vector<8x1xf32>
    %116 = vector.broadcast %106 : vector<8x1xf32> to vector<8x32xf32>
    %117 = arith.subf %98, %116 : vector<8x32xf32>
    %cst_42 = arith.constant 9.99999974E-6 : f32
    %118 = vector.broadcast %cst_42 : f32 to vector<8x1xf32>
    %119 = arith.addf %115, %118 : vector<8x1xf32>
    %120 = math.rsqrt %119 : vector<8x1xf32>
    %121 = vector.broadcast %120 : vector<8x1xf32> to vector<8x32xf32>
    %122 = arith.mulf %117, %121 : vector<8x32xf32>
    %123 = vector.broadcast %100 : vector<1x32xf32> to vector<8x32xf32>
    %124 = arith.mulf %122, %123 : vector<8x32xf32>
    %125 = vector.broadcast %102 : vector<1x32xf32> to vector<8x32xf32>
    %126 = arith.addf %124, %125 : vector<8x32xf32>
    %127 = arith.truncf %126 : vector<8x32xf32> to vector<8x32xbf16>
    %c0_43 = arith.constant 0 : index
    %c0_44 = arith.constant 0 : index
    %c0_45 = arith.constant 0 : index
    %128 = vector.load %arg14[%c0_43, %c0_44, %c0_45] : memref<1x32x64xbf16, #tpu.memory_space<vmem>>, vector<1x32x64xbf16>
    %129 = vector.shape_cast %128 : vector<1x32x64xbf16> to vector<32x64xbf16>
    %cst_46 = arith.constant dense<0.000000e+00> : vector<8x64xf32>
    %130 = tpu.matmul %127, %129, %cst_46 {dimension_numbers = #tpu.dot_dimension_numbers<[1], [0], [0], [1], [0, 0, 1, 1], [], []>} : vector<8x32xbf16>, vector<32x64xbf16>, vector<8x64xf32> -> vector<8x64xf32>
    %c0_47 = arith.constant 0 : index
    %c0_48 = arith.constant 0 : index
    %c0_49 = arith.constant 0 : index
    %131 = vector.load %arg15[%c0_47, %c0_48, %c0_49] : memref<1x1x64xf32, #tpu.memory_space<vmem>>, vector<1x1x64xf32>
    %132 = vector.shape_cast %131 : vector<1x1x64xf32> to vector<1x64xf32>
    %133 = vector.broadcast %132 : vector<1x64xf32> to vector<8x64xf32>
    %134 = arith.addf %130, %133 : vector<8x64xf32>
    %cst_50 = arith.constant 0.000000e+00 : f32
    %135 = vector.broadcast %cst_50 : f32 to vector<8x64xf32>
    %136 = arith.maximumf %134, %135 : vector<8x64xf32>
    %137 = arith.truncf %136 : vector<8x64xf32> to vector<8x64xbf16>
    %c0_51 = arith.constant 0 : index
    %c0_52 = arith.constant 0 : index
    %c0_53 = arith.constant 0 : index
    %138 = vector.load %arg16[%c0_51, %c0_52, %c0_53] : memref<1x64x32xbf16, #tpu.memory_space<vmem>>, vector<1x64x32xbf16>
    %139 = vector.shape_cast %138 : vector<1x64x32xbf16> to vector<64x32xbf16>
    %cst_54 = arith.constant dense<0.000000e+00> : vector<8x32xf32>
    %140 = tpu.matmul %137, %139, %cst_54 {dimension_numbers = #tpu.dot_dimension_numbers<[1], [0], [0], [1], [0, 0, 1, 1], [], []>} : vector<8x64xbf16>, vector<64x32xbf16>, vector<8x32xf32> -> vector<8x32xf32>
    %c0_55 = arith.constant 0 : index
    %c0_56 = arith.constant 0 : index
    %c0_57 = arith.constant 0 : index
    %141 = vector.load %arg17[%c0_55, %c0_56, %c0_57] : memref<1x1x32xf32, #tpu.memory_space<vmem>>, vector<1x1x32xf32>
    %142 = vector.shape_cast %141 : vector<1x1x32xf32> to vector<1x32xf32>
    %143 = vector.broadcast %142 : vector<1x32xf32> to vector<8x32xf32>
    %144 = arith.addf %140, %143 : vector<8x32xf32>
    %145 = arith.addf %126, %144 : vector<8x32xf32>
    %c0_58 = arith.constant 0 : index
    %c0_59 = arith.constant 0 : index
    %c0_60 = arith.constant 0 : index
    %146 = vector.load %arg18[%c0_58, %c0_59, %c0_60] : memref<1x1x32xf32, #tpu.memory_space<vmem>>, vector<1x1x32xf32>
    %147 = vector.shape_cast %146 : vector<1x1x32xf32> to vector<1x32xf32>
    %c0_61 = arith.constant 0 : index
    %c0_62 = arith.constant 0 : index
    %c0_63 = arith.constant 0 : index
    %148 = vector.load %arg19[%c0_61, %c0_62, %c0_63] : memref<1x1x32xf32, #tpu.memory_space<vmem>>, vector<1x1x32xf32>
    %149 = vector.shape_cast %148 : vector<1x1x32xf32> to vector<1x32xf32>
    %cst_64 = arith.constant dense<0.000000e+00> : vector<8xf32>
    %150 = vector.multi_reduction <add>, %145, %cst_64 [1] : vector<8x32xf32> to vector<8xf32>
    %151 = vector.shape_cast %150 : vector<8xf32> to vector<8x1xf32>
    %cst_65 = arith.constant 3.200000e+01 : f32
    %152 = vector.broadcast %cst_65 : f32 to vector<8x1xf32>
    %153 = arith.divf %151, %152 : vector<8x1xf32>
    %154 = vector.broadcast %153 : vector<8x1xf32> to vector<8x32xf32>
    %155 = arith.subf %145, %154 : vector<8x32xf32>
    %156 = vector.broadcast %153 : vector<8x1xf32> to vector<8x32xf32>
    %157 = arith.subf %145, %156 : vector<8x32xf32>
    %158 = arith.mulf %155, %157 : vector<8x32xf32>
    %cst_66 = arith.constant dense<0.000000e+00> : vector<8xf32>
    %159 = vector.multi_reduction <add>, %158, %cst_66 [1] : vector<8x32xf32> to vector<8xf32>
    %160 = vector.shape_cast %159 : vector<8xf32> to vector<8x1xf32>
    %cst_67 = arith.constant 3.200000e+01 : f32
    %161 = vector.broadcast %cst_67 : f32 to vector<8x1xf32>
    %162 = arith.divf %160, %161 : vector<8x1xf32>
    %163 = vector.broadcast %153 : vector<8x1xf32> to vector<8x32xf32>
    %164 = arith.subf %145, %163 : vector<8x32xf32>
    %cst_68 = arith.constant 9.99999974E-6 : f32
    %165 = vector.broadcast %cst_68 : f32 to vector<8x1xf32>
    %166 = arith.addf %162, %165 : vector<8x1xf32>
    %167 = math.rsqrt %166 : vector<8x1xf32>
    %168 = vector.broadcast %167 : vector<8x1xf32> to vector<8x32xf32>
    %169 = arith.mulf %164, %168 : vector<8x32xf32>
    %170 = vector.broadcast %147 : vector<1x32xf32> to vector<8x32xf32>
    %171 = arith.mulf %169, %170 : vector<8x32xf32>
    %172 = vector.broadcast %149 : vector<1x32xf32> to vector<8x32xf32>
    %173 = arith.addf %171, %172 : vector<8x32xf32>
    %c0_69 = arith.constant 0 : index
    %c0_70 = arith.constant 0 : index
    %174 = vector.load %arg21[%c0_69, %c0_70] : memref<8x32xf32, #tpu.memory_space<vmem>>, vector<8x32xf32>
    tpu.vector_store %arg21[%c0_69, %c0_70], %173 {strides = array<i32>} : memref<8x32xf32, #tpu.memory_space<vmem>>, vector<8x32xf32>,
    %c1_i32 = arith.constant 1 : i32
    %175 = arith.cmpi eq, %arg1, %c1_i32 : i32
    %176 = arith.extui %175 : i1 to i32
    %c0_i32_71 = arith.constant 0 : i32
    %177 = arith.cmpi ne, %176, %c0_i32_71 : i32
    scf.if %177 {
      %c0_72 = arith.constant 0 : index
      %c0_73 = arith.constant 0 : index
      %c0_74 = arith.constant 0 : index
      %178 = vector.load %arg20[%c0_72, %c0_73, %c0_74] : memref<1x8x32xf32, #tpu.memory_space<vmem>>, vector<1x8x32xf32>
      %179 = vector.shape_cast %178 : vector<1x8x32xf32> to vector<8x32xf32>
      %180 = vector.shape_cast %173 : vector<8x32xf32> to vector<1x8x32xf32>
      tpu.vector_store %arg20[%c0_72, %c0_73, %c0_74], %180 {strides = array<i32>} : memref<1x8x32xf32, #tpu.memory_space<vmem>>, vector<1x8x32xf32>,
    } else {
    }
    return
  }
  func.func @transform_0(%arg0: i32, %arg1: i32) -> (i32, i32, i32) {
    %c0_i32 = arith.constant 0 : i32
    %c0_i32_0 = arith.constant 0 : i32
    %c0_i32_1 = arith.constant 0 : i32
    return %arg0, %c0_i32, %c0_i32_0 : i32, i32, i32
  }
  func.func @transform_1(%arg0: i32, %arg1: i32) -> (i32, i32) {
    %c0_i32 = arith.constant 0 : i32
    %c0_i32_0 = arith.constant 0 : i32
    %c0_i32_1 = arith.constant 0 : i32
    return %c0_i32, %c0_i32_0 : i32, i32
  }
  func.func @transform_2(%arg0: i32, %arg1: i32) -> (i32, i32) {
    %c0_i32 = arith.constant 0 : i32
    %c0_i32_0 = arith.constant 0 : i32
    %c0_i32_1 = arith.constant 0 : i32
    return %c0_i32, %c0_i32_0 : i32, i32
  }
  func.func @transform_3(%arg0: i32, %arg1: i32) -> (i32, i32) {
    %c0_i32 = arith.constant 0 : i32
    %c0_i32_0 = arith.constant 0 : i32
    %c0_i32_1 = arith.constant 0 : i32
    return %c0_i32, %c0_i32_0 : i32, i32
  }
  func.func @transform_4(%arg0: i32, %arg1: i32) -> (i32, i32) {
    %c0_i32 = arith.constant 0 : i32
    %c0_i32_0 = arith.constant 0 : i32
    %c0_i32_1 = arith.constant 0 : i32
    return %c0_i32, %c0_i32_0 : i32, i32
  }
  func.func @transform_5(%arg0: i32, %arg1: i32) -> (i32, i32) {
    %c0_i32 = arith.constant 0 : i32
    %c0_i32_0 = arith.constant 0 : i32
    %c0_i32_1 = arith.constant 0 : i32
    return %c0_i32, %c0_i32_0 : i32, i32
  }
  func.func @transform_6(%arg0: i32, %arg1: i32) -> (i32, i32, i32) {
    %c0_i32 = arith.constant 0 : i32
    %c0_i32_0 = arith.constant 0 : i32
    %c0_i32_1 = arith.constant 0 : i32
    return %arg1, %c0_i32, %c0_i32_0 : i32, i32, i32
  }
  func.func @transform_7(%arg0: i32, %arg1: i32) -> (i32, i32, i32) {
    %c0_i32 = arith.constant 0 : i32
    %c0_i32_0 = arith.constant 0 : i32
    %c0_i32_1 = arith.constant 0 : i32
    return %arg1, %c0_i32, %c0_i32_0 : i32, i32, i32
  }
  func.func @transform_8(%arg0: i32, %arg1: i32) -> (i32, i32, i32) {
    %c0_i32 = arith.constant 0 : i32
    %c0_i32_0 = arith.constant 0 : i32
    %c0_i32_1 = arith.constant 0 : i32
    return %arg1, %c0_i32, %c0_i32_0 : i32, i32, i32
  }
  func.func @transform_9(%arg0: i32, %arg1: i32) -> (i32, i32, i32) {
    %c0_i32 = arith.constant 0 : i32
    %c0_i32_0 = arith.constant 0 : i32
    %c0_i32_1 = arith.constant 0 : i32
    return %arg1, %c0_i32, %c0_i32_0 : i32, i32, i32
  }
  func.func @transform_10(%arg0: i32, %arg1: i32) -> (i32, i32, i32) {
    %c0_i32 = arith.constant 0 : i32
    %c0_i32_0 = arith.constant 0 : i32
    %c0_i32_1 = arith.constant 0 : i32
    return %arg1, %c0_i32, %c0_i32_0 : i32, i32, i32
  }
  func.func @transform_11(%arg0: i32, %arg1: i32) -> (i32, i32, i32) {
    %c0_i32 = arith.constant 0 : i32
    %c0_i32_0 = arith.constant 0 : i32
    %c0_i32_1 = arith.constant 0 : i32
    return %arg1, %c0_i32, %c0_i32_0 : i32, i32, i32
  }
  func.func @transform_12(%arg0: i32, %arg1: i32) -> (i32, i32, i32) {
    %c0_i32 = arith.constant 0 : i32
    %c0_i32_0 = arith.constant 0 : i32
    %c0_i32_1 = arith.constant 0 : i32
    return %arg1, %c0_i32, %c0_i32_0 : i32, i32, i32
  }
  func.func @transform_13(%arg0: i32, %arg1: i32) -> (i32, i32, i32) {
    %c0_i32 = arith.constant 0 : i32
    %c0_i32_0 = arith.constant 0 : i32
    %c0_i32_1 = arith.constant 0 : i32
    return %arg1, %c0_i32, %c0_i32_0 : i32, i32, i32
  }
  func.func @transform_14(%arg0: i32, %arg1: i32) -> (i32, i32, i32) {
    %c0_i32 = arith.constant 0 : i32
    %c0_i32_0 = arith.constant 0 : i32
    %c0_i32_1 = arith.constant 0 : i32
    return %arg1, %c0_i32, %c0_i32_0 : i32, i32, i32
  }
  func.func @transform_15(%arg0: i32, %arg1: i32) -> (i32, i32, i32) {
    %c0_i32 = arith.constant 0 : i32
    %c0_i32_0 = arith.constant 0 : i32
    %c0_i32_1 = arith.constant 0 : i32
    return %arg1, %c0_i32, %c0_i32_0 : i32, i32, i32
  }
  func.func @transform_16(%arg0: i32, %arg1: i32) -> (i32, i32, i32) {
    %c0_i32 = arith.constant 0 : i32
    %c0_i32_0 = arith.constant 0 : i32
    %c0_i32_1 = arith.constant 0 : i32
    return %arg1, %c0_i32, %c0_i32_0 : i32, i32, i32
  }
  func.func @transform_17(%arg0: i32, %arg1: i32) -> (i32, i32, i32) {
    %c0_i32 = arith.constant 0 : i32
    %c0_i32_0 = arith.constant 0 : i32
    %c0_i32_1 = arith.constant 0 : i32
    return %arg1, %c0_i32, %c0_i32_0 : i32, i32, i32
  }
  func.func @transform_18(%arg0: i32, %arg1: i32) -> (i32, i32, i32) {
    %c0_i32 = arith.constant 0 : i32
    %c0_i32_0 = arith.constant 0 : i32
    %c0_i32_1 = arith.constant 0 : i32
    return %arg0, %c0_i32, %c0_i32_0 : i32, i32, i32
  }
}

</mosaic_0001>

<llo_original>
// kernel: encoder_forward.1
$region0: #{encoder_forward.1}
  #allocation0 [shape = 'u32[]', space=smem, size = 0x4, offset = 0x4, fixed_abs, tag = 'smem constant byte address 0x4 - core index']
  #allocation1 [shape = 'u32[72,128]{1,0:T(1,128)}', space=vmem, size = 0x9000, scoped, tag = 'internal scratch']
  #allocation2 [shape = 'f32[8,32]{1,0:T(8,128)}', space=vmem, size = 0x1000, scoped, tag = 'scratch operand']
  %s0 = inlined_call_operand.vmem [shape: f32[2,8,32], index: 0, kind: input, shape index: {}]
  %s1 = inlined_call_operand.vmem [shape: f32[8,32], index: 1, kind: input, shape index: {}]
  %s2 = inlined_call_operand.hbm [shape: bf16[32,32], index: 2, kind: input, shape index: {}]
  %s3 = inlined_call_operand.vmem [shape: f32[1,32], index: 3, kind: input, shape index: {}]
  %s4 = inlined_call_operand.hbm [shape: f32[1,32], index: 4, kind: input, shape index: {}]
  %s5 = inlined_call_operand.hbm [shape: f32[1,32], index: 5, kind: input, shape index: {}]
  %s6 = inlined_call_operand.vmem [shape: bf16[2,32,96], index: 6, kind: input, shape index: {}]
  %s7 = inlined_call_operand.hbm [shape: f32[2,1,96], index: 7, kind: input, shape index: {}]
  %s8 = inlined_call_operand.vmem [shape: bf16[2,32,32], index: 8, kind: input, shape index: {}]
  %s9 = inlined_call_operand.hbm [shape: f32[2,1,32], index: 9, kind: input, shape index: {}]
  %s10 = inlined_call_operand.vmem [shape: f32[2,1,32], index: 10, kind: input, shape index: {}]
  %s11 = inlined_call_operand.hbm [shape: f32[2,1,32], index: 11, kind: input, shape index: {}]
  %s12 = inlined_call_operand.vmem [shape: bf16[2,32,64], index: 12, kind: input, shape index: {}]
  %s13 = inlined_call_operand.hbm [shape: f32[2,1,64], index: 13, kind: input, shape index: {}]
  %s14 = inlined_call_operand.vmem [shape: bf16[2,64,32], index: 14, kind: input, shape index: {}]
  %s15 = inlined_call_operand.hbm [shape: f32[2,1,32], index: 15, kind: input, shape index: {}]
  %s16 = inlined_call_operand.vmem [shape: f32[2,1,32], index: 16, kind: input, shape index: {}]
  %s17 = inlined_call_operand.hbm [shape: f32[2,1,32], index: 17, kind: input, shape index: {}]
  %s18 = inlined_call_operand.hbm [shape: f32[2,8,32], index: 18, kind: output, shape index: {}]
  %s19 = sld [smem:[#allocation0]]
  $region149: #{encoder_forward.1} parent=0
    _
  %s21 = ssub.s32 1, %s19
  %s22 = scalar_select 0, %s21, %s19
  $region1: #{encoder_forward.1} parent=0
    #allocation3 [shape = 'u8[8192]{0}', space=vmem, size = 0x2000, scoped, tag = 'input window, operand 2, single buffered']
    #allocation4 [shape = 's32[2]{0}', space=sflag, size = 0x8, scoped, tag = 'scoped memory for encoder_forward.1']
    #allocation5 [shape = 's32[2]{0}', space=sflag, size = 0x8, scoped, tag = 'scoped memory for encoder_forward.1']
    #allocation6 [shape = 'u8[512]{0}', space=vmem, size = 0x400, scoped, tag = 'input window, operand 4, single buffered']
    #allocation7 [shape = 's32[1]{0}', space=sflag, size = 0x4, scoped, tag = 'scoped memory for encoder_forward.1']
    #allocation8 [shape = 'u8[512]{0}', space=vmem, size = 0x400, scoped, tag = 'input window, operand 5, single buffered']
    #allocation9 [shape = 'u8[1024]{0}', space=vmem, size = 0x400, scoped, tag = 'input window, operand 7']
    #allocation10 [shape = 's32[2]{0}', space=sflag, size = 0x8, scoped, tag = 'scoped memory for encoder_forward.1']
    #allocation11 [shape = 'u8[1024]{0}', space=vmem, size = 0x400, scoped, tag = 'input window, operand 9']
    #allocation12 [shape = 'u8[1024]{0}', space=vmem, size = 0x400, scoped, tag = 'input window, operand 11']
    #allocation13 [shape = 's32[2]{0}', space=sflag, size = 0x8, scoped, tag = 'scoped memory for encoder_forward.1']
    #allocation14 [shape = 'u8[1024]{0}', space=vmem, size = 0x400, scoped, tag = 'input window, operand 13']
    #allocation15 [shape = 'u8[1024]{0}', space=vmem, size = 0x400, scoped, tag = 'input window, operand 15']
    #allocation16 [shape = 's32[2]{0}', space=sflag, size = 0x8, scoped, tag = 'scoped memory for encoder_forward.1']
    #allocation17 [shape = 'u8[1024]{0}', space=vmem, size = 0x400, scoped, tag = 'input window, operand 17']
    #allocation18 [shape = 'u8[8192]{0}', space=vmem, size = 0x2000, scoped, tag = 'output window, operand 0']
    %23 = vsyncpa [#allocation4], 0
    %24 = vsyncpa [#allocation7], 0
    %25 = vsyncpa [#allocation10], 0
    %s26 = scalar_lea.sflag [#allocation10], 1
    %27 = vsyncpa %s26, 0
    %28 = vsyncpa [#allocation13], 0
    %s29 = scalar_lea.sflag [#allocation13], 1
    %30 = vsyncpa %s29, 0
    %31 = vsyncpa [#allocation16], 0
    %s32 = scalar_lea.sflag [#allocation16], 1
    %33 = vsyncpa %s32, 0
    %34 = vsyncpa [#allocation5], 0
    %s35 = scalar_lea.sflag [#allocation5], 1
    %36 = vsyncpa %s35, 0
    loop: start=0, step=1, limit=6
    $region2: #{encoder_forward.1} parent=1 // loop_pre_header
      _
    $region3: #{encoder_forward.1} parent=1 // loop_header
      %s38 = sphi 0, %s42
      %p39 = scmp.ge.s32.totalorder %s38, 6
      %s45 = sphi 0, %s57
      %s46 = sphi 0, %s53
      %s47 = sphi 0, %s45
      %s48 = sphi 0, %s46
      %s49 = sphi 0, %s47
      %s50 = sphi 0, %s48
      %s60 = sphi 0, %s62
      %s63 = sphi 0, %s60
      %s64 = sphi 0, %s63
      %s80 = sphi 0, %s64
      %s84 = sphi 0, %s84
      %s86 = sphi 0, %s84
      %s87 = sphi 0, %s86
      %s101 = sphi 0, %s87
      %s105 = sphi 0, %s105
      %s107 = sphi 0, %s105
      %s108 = sphi 0, %s107
      %s122 = sphi 0, %s108
      %s126 = sphi 0, %s126
      %s128 = sphi 0, %s126
      %s129 = sphi 0, %s128
      %s143 = sphi 0, %s129
      %s147 = sphi 0, %s147
      %s149 = sphi 0, %s147
      %s150 = sphi 0, %s149
      %s164 = sphi 0, %s150
      %s168 = sphi 0, %s168
      %s170 = sphi 0, %s168
      %s171 = sphi 0, %s170
      %s185 = sphi 0, %s171
      %s191 = sphi 0, %s193
      %s194 = sphi 0, %s191
      %s195 = sphi 0, %s194
      %s211 = sphi 0, %s195
      %s217 = sphi 0, %s219
      %s220 = sphi 0, %s217
      %s221 = sphi 0, %s220
      %s237 = sphi 0, %s221
      %s243 = sphi 0, %s245
      %s246 = sphi 0, %s243
      %s247 = sphi 0, %s246
      %s263 = sphi 0, %s247
      %s269 = sphi 0, %s271
      %s272 = sphi 0, %s269
      %s273 = sphi 0, %s272
      %s289 = sphi 0, %s273
      %s295 = sphi 0, %s297
      %s298 = sphi 0, %s295
      %s299 = sphi 0, %s298
      %s315 = sphi 0, %s299
      %s321 = sphi 0, %s323
      %s324 = sphi 0, %s321
      %s325 = sphi 0, %s324
      %s341 = sphi 0, %s325
      %s347 = sphi 0, %s349
      %s350 = sphi 0, %s347
      %s351 = sphi 0, %s350
      %s367 = sphi 0, %s351
      %s373 = sphi 0, %s375
      %s376 = sphi 0, %s373
      %s377 = sphi 0, %s376
      %s393 = sphi 0, %s377
      %s399 = sphi 0, %s401
      %s402 = sphi 0, %s399
      %s403 = sphi 0, %s402
      %s419 = sphi 0, %s403
      %s425 = sphi 0, %s427
      %s428 = sphi 0, %s425
      %s429 = sphi 0, %s428
      %s445 = sphi 0, %s429
      %s451 = sphi 0, %s453
      %s454 = sphi 0, %s451
      %s455 = sphi 0, %s454
      %s471 = sphi 0, %s455
      %s477 = sphi 0, %s479
      %s480 = sphi 0, %s477
      %s481 = sphi 0, %s480
      %s497 = sphi 0, %s481
      %s503 = sphi 0, %s505
      %s506 = sphi 0, %s503
      %s507 = sphi 0, %s506
      %s523 = sphi 0, %s507
    $region4: #{encoder_forward.1} parent=1 // loop_header_branch
      %41 = sbr.rel (%p39) target = $region8
    $region5: #{encoder_forward.1} parent=1 // loop_body
      %s43 = ssub.s32 %s38, 1
      %s44 = ssub.s32 %s38, 2
      %s51 = sadd.s32 1, %s46
      %p52 = scmp.ge.s32.totalorder %s51, 2
      %s53 = scalar_select %p52, 0, %s51
      %s54 = sadd.s32 1, %s45
      %s55 = scalar_select %p52, %s54, %s45
      %p56 = scmp.ge.s32.totalorder %s55, 2
      %s57 = scalar_select %p56, 0, %s55
      %s58 = ssub.s32 %s45, %s57
      %p59 = scmp.eq.s32.totalorder %s58, 0
      %s61 = sadd.s32 %s60, 1
      %s62 = scalar_select %p59, %s60, %s61
      %p65 = pneg %p59
      %p66 = scmp.eq.s32.totalorder %s38, 3
      %p67 = por %p65, %p66
      %p68 = scmp.ne.s32.totalorder %s60, %s63
      %p69 = scmp.eq.s32.totalorder %s38, 0
      %p70 = por %p68, %p69
      %p71 = scmp.ne.s32.totalorder %s60, %s63
      %p72 = scmp.eq.s32.totalorder %s43, 3
      %p73 = por %p71, %p72
      %p74 = scmp.ne.s32.totalorder %s63, %s64
      %p75 = scmp.eq.s32.totalorder %s43, 0
      %p76 = por %p74, %p75
      %p77 = scmp.ne.s32.totalorder %s63, %s64
      %p78 = scmp.eq.s32.totalorder %s44, 3
      %p79 = por %p77, %p78
      %p81 = scmp.ne.s32.totalorder %s64, %s80
      %p82 = scmp.eq.s32.totalorder %s44, 0
      %p83 = por %p81, %p82
      %s85 = sadd.s32 %s84, 1
      %p88 = scmp.eq.s32.totalorder %s38, 3
      %p89 = scmp.ne.s32.totalorder %s84, %s86
      %p90 = scmp.eq.s32.totalorder %s38, 0
      %p91 = por %p89, %p90
      %p92 = scmp.ne.s32.totalorder %s84, %s86
      %p93 = scmp.eq.s32.totalorder %s43, 3
      %p94 = por %p92, %p93
      %p95 = scmp.ne.s32.totalorder %s86, %s87
      %p96 = scmp.eq.s32.totalorder %s43, 0
      %p97 = por %p95, %p96
      %p98 = scmp.ne.s32.totalorder %s86, %s87
      %p99 = scmp.eq.s32.totalorder %s44, 3
      %p100 = por %p98, %p99
      %p102 = scmp.ne.s32.totalorder %s87, %s101
      %p103 = scmp.eq.s32.totalorder %s44, 0
      %p104 = por %p102, %p103
      %s106 = sadd.s32 %s105, 1
      %p109 = scmp.eq.s32.totalorder %s38, 3
      %p110 = scmp.ne.s32.totalorder %s105, %s107
      %p111 = scmp.eq.s32.totalorder %s38, 0
      %p112 = por %p110, %p111
      %p113 = scmp.ne.s32.totalorder %s105, %s107
      %p114 = scmp.eq.s32.totalorder %s43, 3
      %p115 = por %p113, %p114
      %p116 = scmp.ne.s32.totalorder %s107, %s108
      %p117 = scmp.eq.s32.totalorder %s43, 0
      %p118 = por %p116, %p117
      %p119 = scmp.ne.s32.totalorder %s107, %s108
      %p120 = scmp.eq.s32.totalorder %s44, 3
      %p121 = por %p119, %p120
      %p123 = scmp.ne.s32.totalorder %s108, %s122
      %p124 = scmp.eq.s32.totalorder %s44, 0
      %p125 = por %p123, %p124
      %s127 = sadd.s32 %s126, 1
      %p130 = scmp.eq.s32.totalorder %s38, 3
      %p131 = scmp.ne.s32.totalorder %s126, %s128
      %p132 = scmp.eq.s32.totalorder %s38, 0
      %p133 = por %p131, %p132
      %p134 = scmp.ne.s32.totalorder %s126, %s128
      %p135 = scmp.eq.s32.totalorder %s43, 3
      %p136 = por %p134, %p135
      %p137 = scmp.ne.s32.totalorder %s128, %s129
      %p138 = scmp.eq.s32.totalorder %s43, 0
      %p139 = por %p137, %p138
      %p140 = scmp.ne.s32.totalorder %s128, %s129
      %p141 = scmp.eq.s32.totalorder %s44, 3
      %p142 = por %p140, %p141
      %p144 = scmp.ne.s32.totalorder %s129, %s143
      %p145 = scmp.eq.s32.totalorder %s44, 0
      %p146 = por %p144, %p145
      %s148 = sadd.s32 %s147, 1
      %p151 = scmp.eq.s32.totalorder %s38, 3
      %p152 = scmp.ne.s32.totalorder %s147, %s149
      %p153 = scmp.eq.s32.totalorder %s38, 0
      %p154 = por %p152, %p153
      %p155 = scmp.ne.s32.totalorder %s147, %s149
      %p156 = scmp.eq.s32.totalorder %s43, 3
      %p157 = por %p155, %p156
      %p158 = scmp.ne.s32.totalorder %s149, %s150
      %p159 = scmp.eq.s32.totalorder %s43, 0
      %p160 = por %p158, %p159
      %p161 = scmp.ne.s32.totalorder %s149, %s150
      %p162 = scmp.eq.s32.totalorder %s44, 3
      %p163 = por %p161, %p162
      %p165 = scmp.ne.s32.totalorder %s150, %s164
      %p166 = scmp.eq.s32.totalorder %s44, 0
      %p167 = por %p165, %p166
      %s169 = sadd.s32 %s168, 1
      %p172 = scmp.eq.s32.totalorder %s38, 3
      %p173 = scmp.ne.s32.totalorder %s168, %s170
      %p174 = scmp.eq.s32.totalorder %s38, 0
      %p175 = por %p173, %p174
      %p176 = scmp.ne.s32.totalorder %s168, %s170
      %p177 = scmp.eq.s32.totalorder %s43, 3
      %p178 = por %p176, %p177
      %p179 = scmp.ne.s32.totalorder %s170, %s171
      %p180 = scmp.eq.s32.totalorder %s43, 0
      %p181 = por %p179, %p180
      %p182 = scmp.ne.s32.totalorder %s170, %s171
      %p183 = scmp.eq.s32.totalorder %s44, 3
      %p184 = por %p182, %p183
      %p186 = scmp.ne.s32.totalorder %s171, %s185
      %p187 = scmp.eq.s32.totalorder %s44, 0
      %p188 = por %p186, %p187
      %s189 = ssub.s32 %s46, %s53
      %p190 = scmp.eq.s32.totalorder %s189, 0
      %s192 = sadd.s32 %s191, 1
      %s193 = scalar_select %p190, %s191, %s192
      %p196 = pneg %p190
      %p197 = scmp.eq.s32.totalorder %s38, 3
      %p198 = por %p196, %p197
      %p199 = scmp.ne.s32.totalorder %s191, %s194
      %p200 = scmp.eq.s32.totalorder %s38, 0
      %p201 = por %p199, %p200
      %p202 = scmp.ne.s32.totalorder %s191, %s194
      %p203 = scmp.eq.s32.totalorder %s43, 3
      %p204 = por %p202, %p203
      %p205 = scmp.ne.s32.totalorder %s194, %s195
      %p206 = scmp.eq.s32.totalorder %s43, 0
      %p207 = por %p205, %p206
      %p208 = scmp.ne.s32.totalorder %s194, %s195
      %p209 = scmp.eq.s32.totalorder %s44, 3
      %p210 = por %p208, %p209
      %p212 = scmp.ne.s32.totalorder %s195, %s211
      %p213 = scmp.eq.s32.totalorder %s44, 0
      %p214 = por %p212, %p213
      %s215 = ssub.s32 %s46, %s53
      %p216 = scmp.eq.s32.totalorder %s215, 0
      %s218 = sadd.s32 %s217, 1
      %s219 = scalar_select %p216, %s217, %s218
      %p222 = pneg %p216
      %p223 = scmp.eq.s32.totalorder %s38, 3
      %p224 = por %p222, %p223
      %p225 = scmp.ne.s32.totalorder %s217, %s220
      %p226 = scmp.eq.s32.totalorder %s38, 0
      %p227 = por %p225, %p226
      %p228 = scmp.ne.s32.totalorder %s217, %s220
      %p229 = scmp.eq.s32.totalorder %s43, 3
      %p230 = por %p228, %p229
      %p231 = scmp.ne.s32.totalorder %s220, %s221
      %p232 = scmp.eq.s32.totalorder %s43, 0
      %p233 = por %p231, %p232
      %p234 = scmp.ne.s32.totalorder %s220, %s221
      %p235 = scmp.eq.s32.totalorder %s44, 3
      %p236 = por %p234, %p235
      %p238 = scmp.ne.s32.totalorder %s221, %s237
      %p239 = scmp.eq.s32.totalorder %s44, 0
      %p240 = por %p238, %p239
      %s241 = ssub.s32 %s46, %s53
      %p242 = scmp.eq.s32.totalorder %s241, 0
      %s244 = sadd.s32 %s243, 1
      %s245 = scalar_select %p242, %s243, %s244
      %p248 = pneg %p242
      %p249 = scmp.eq.s32.totalorder %s38, 3
      %p250 = por %p248, %p249
      %p251 = scmp.ne.s32.totalorder %s243, %s246
      %p252 = scmp.eq.s32.totalorder %s38, 0
      %p253 = por %p251, %p252
      %p254 = scmp.ne.s32.totalorder %s243, %s246
      %p255 = scmp.eq.s32.totalorder %s43, 3
      %p256 = por %p254, %p255
      %p257 = scmp.ne.s32.totalorder %s246, %s247
      %p258 = scmp.eq.s32.totalorder %s43, 0
      %p259 = por %p257, %p258
      %p260 = scmp.ne.s32.totalorder %s246, %s247
      %p261 = scmp.eq.s32.totalorder %s44, 3
      %p262 = por %p260, %p261
      %p264 = scmp.ne.s32.totalorder %s247, %s263
      %p265 = scmp.eq.s32.totalorder %s44, 0
      %p266 = por %p264, %p265
      %s267 = ssub.s32 %s46, %s53
      %p268 = scmp.eq.s32.totalorder %s267, 0
      %s270 = sadd.s32 %s269, 1
      %s271 = scalar_select %p268, %s269, %s270
      %p274 = pneg %p268
      %p275 = scmp.eq.s32.totalorder %s38, 3
      %p276 = por %p274, %p275
      %p277 = scmp.ne.s32.totalorder %s269, %s272
      %p278 = scmp.eq.s32.totalorder %s38, 0
      %p279 = por %p277, %p278
      %p280 = scmp.ne.s32.totalorder %s269, %s272
      %p281 = scmp.eq.s32.totalorder %s43, 3
      %p282 = por %p280, %p281
      %p283 = scmp.ne.s32.totalorder %s272, %s273
      %p284 = scmp.eq.s32.totalorder %s43, 0
      %p285 = por %p283, %p284
      %p286 = scmp.ne.s32.totalorder %s272, %s273
      %p287 = scmp.eq.s32.totalorder %s44, 3
      %p288 = por %p286, %p287
      %p290 = scmp.ne.s32.totalorder %s273, %s289
      %p291 = scmp.eq.s32.totalorder %s44, 0
      %p292 = por %p290, %p291
      %s293 = ssub.s32 %s46, %s53
      %p294 = scmp.eq.s32.totalorder %s293, 0
      %s296 = sadd.s32 %s295, 1
      %s297 = scalar_select %p294, %s295, %s296
      %p300 = pneg %p294
      %p301 = scmp.eq.s32.totalorder %s38, 3
      %p302 = por %p300, %p301
      %p303 = scmp.ne.s32.totalorder %s295, %s298
      %p304 = scmp.eq.s32.totalorder %s38, 0
      %p305 = por %p303, %p304
      %p306 = scmp.ne.s32.totalorder %s295, %s298
      %p307 = scmp.eq.s32.totalorder %s43, 3
      %p308 = por %p306, %p307
      %p309 = scmp.ne.s32.totalorder %s298, %s299
      %p310 = scmp.eq.s32.totalorder %s43, 0
      %p311 = por %p309, %p310
      %p312 = scmp.ne.s32.totalorder %s298, %s299
      %p313 = scmp.eq.s32.totalorder %s44, 3
      %p314 = por %p312, %p313
      %p316 = scmp.ne.s32.totalorder %s299, %s315
      %p317 = scmp.eq.s32.totalorder %s44, 0
      %p318 = por %p316, %p317
      %s319 = ssub.s32 %s46, %s53
      %p320 = scmp.eq.s32.totalorder %s319, 0
      %s322 = sadd.s32 %s321, 1
      %s323 = scalar_select %p320, %s321, %s322
      %p326 = pneg %p320
      %p327 = scmp.eq.s32.totalorder %s38, 3
      %p328 = por %p326, %p327
      %p329 = scmp.ne.s32.totalorder %s321, %s324
      %p330 = scmp.eq.s32.totalorder %s38, 0
      %p331 = por %p329, %p330
      %p332 = scmp.ne.s32.totalorder %s321, %s324
      %p333 = scmp.eq.s32.totalorder %s43, 3
      %p334 = por %p332, %p333
      %p335 = scmp.ne.s32.totalorder %s324, %s325
      %p336 = scmp.eq.s32.totalorder %s43, 0
      %p337 = por %p335, %p336
      %p338 = scmp.ne.s32.totalorder %s324, %s325
      %p339 = scmp.eq.s32.totalorder %s44, 3
      %p340 = por %p338, %p339
      %p342 = scmp.ne.s32.totalorder %s325, %s341
      %p343 = scmp.eq.s32.totalorder %s44, 0
      %p344 = por %p342, %p343
      %s345 = ssub.s32 %s46, %s53
      %p346 = scmp.eq.s32.totalorder %s345, 0
      %s348 = sadd.s32 %s347, 1
      %s349 = scalar_select %p346, %s347, %s348
      %p352 = pneg %p346
      %p353 = scmp.eq.s32.totalorder %s38, 3
      %p354 = por %p352, %p353
      %p355 = scmp.ne.s32.totalorder %s347, %s350
      %p356 = scmp.eq.s32.totalorder %s38, 0
      %p357 = por %p355, %p356
      %p358 = scmp.ne.s32.totalorder %s347, %s350
      %p359 = scmp.eq.s32.totalorder %s43, 3
      %p360 = por %p358, %p359
      %p361 = scmp.ne.s32.totalorder %s350, %s351
      %p362 = scmp.eq.s32.totalorder %s43, 0
      %p363 = por %p361, %p362
      %p364 = scmp.ne.s32.totalorder %s350, %s351
      %p365 = scmp.eq.s32.totalorder %s44, 3
      %p366 = por %p364, %p365
      %p368 = scmp.ne.s32.totalorder %s351, %s367
      %p369 = scmp.eq.s32.totalorder %s44, 0
      %p370 = por %p368, %p369
      %s371 = ssub.s32 %s46, %s53
      %p372 = scmp.eq.s32.totalorder %s371, 0
      %s374 = sadd.s32 %s373, 1
      %s375 = scalar_select %p372, %s373, %s374
      %p378 = pneg %p372
      %p379 = scmp.eq.s32.totalorder %s38, 3
      %p380 = por %p378, %p379
      %p381 = scmp.ne.s32.totalorder %s373, %s376
      %p382 = scmp.eq.s32.totalorder %s38, 0
      %p383 = por %p381, %p382
      %p384 = scmp.ne.s32.totalorder %s373, %s376
      %p385 = scmp.eq.s32.totalorder %s43, 3
      %p386 = por %p384, %p385
      %p387 = scmp.ne.s32.totalorder %s376, %s377
      %p388 = scmp.eq.s32.totalorder %s43, 0
      %p389 = por %p387, %p388
      %p390 = scmp.ne.s32.totalorder %s376, %s377
      %p391 = scmp.eq.s32.totalorder %s44, 3
      %p392 = por %p390, %p391
      %p394 = scmp.ne.s32.totalorder %s377, %s393
      %p395 = scmp.eq.s32.totalorder %s44, 0
      %p396 = por %p394, %p395
      %s397 = ssub.s32 %s46, %s53
      %p398 = scmp.eq.s32.totalorder %s397, 0
      %s400 = sadd.s32 %s399, 1
      %s401 = scalar_select %p398, %s399, %s400
      %p404 = pneg %p398
      %p405 = scmp.eq.s32.totalorder %s38, 3
      %p406 = por %p404, %p405
      %p407 = scmp.ne.s32.totalorder %s399, %s402
      %p408 = scmp.eq.s32.totalorder %s38, 0
      %p409 = por %p407, %p408
      %p410 = scmp.ne.s32.totalorder %s399, %s402
      %p411 = scmp.eq.s32.totalorder %s43, 3
      %p412 = por %p410, %p411
      %p413 = scmp.ne.s32.totalorder %s402, %s403
      %p414 = scmp.eq.s32.totalorder %s43, 0
      %p415 = por %p413, %p414
      %p416 = scmp.ne.s32.totalorder %s402, %s403
      %p417 = scmp.eq.s32.totalorder %s44, 3
      %p418 = por %p416, %p417
      %p420 = scmp.ne.s32.totalorder %s403, %s419
      %p421 = scmp.eq.s32.totalorder %s44, 0
      %p422 = por %p420, %p421
      %s423 = ssub.s32 %s46, %s53
      %p424 = scmp.eq.s32.totalorder %s423, 0
      %s426 = sadd.s32 %s425, 1
      %s427 = scalar_select %p424, %s425, %s426
      %p430 = pneg %p424
      %p431 = scmp.eq.s32.totalorder %s38, 3
      %p432 = por %p430, %p431
      %p433 = scmp.ne.s32.totalorder %s425, %s428
      %p434 = scmp.eq.s32.totalorder %s38, 0
      %p435 = por %p433, %p434
      %p436 = scmp.ne.s32.totalorder %s425, %s428
      %p437 = scmp.eq.s32.totalorder %s43, 3
      %p438 = por %p436, %p437
      %p439 = scmp.ne.s32.totalorder %s428, %s429
      %p440 = scmp.eq.s32.totalorder %s43, 0
      %p441 = por %p439, %p440
      %p442 = scmp.ne.s32.totalorder %s428, %s429
      %p443 = scmp.eq.s32.totalorder %s44, 3
      %p444 = por %p442, %p443
      %p446 = scmp.ne.s32.totalorder %s429, %s445
      %p447 = scmp.eq.s32.totalorder %s44, 0
      %p448 = por %p446, %p447
      %s449 = ssub.s32 %s46, %s53
      %p450 = scmp.eq.s32.totalorder %s449, 0
      %s452 = sadd.s32 %s451, 1
      %s453 = scalar_select %p450, %s451, %s452
      %p456 = pneg %p450
      %p457 = scmp.eq.s32.totalorder %s38, 3
      %p458 = por %p456, %p457
      %p459 = scmp.ne.s32.totalorder %s451, %s454
      %p460 = scmp.eq.s32.totalorder %s38, 0
      %p461 = por %p459, %p460
      %p462 = scmp.ne.s32.totalorder %s451, %s454
      %p463 = scmp.eq.s32.totalorder %s43, 3
      %p464 = por %p462, %p463
      %p465 = scmp.ne.s32.totalorder %s454, %s455
      %p466 = scmp.eq.s32.totalorder %s43, 0
      %p467 = por %p465, %p466
      %p468 = scmp.ne.s32.totalorder %s454, %s455
      %p469 = scmp.eq.s32.totalorder %s44, 3
      %p470 = por %p468, %p469
      %p472 = scmp.ne.s32.totalorder %s455, %s471
      %p473 = scmp.eq.s32.totalorder %s44, 0
      %p474 = por %p472, %p473
      %s475 = ssub.s32 %s46, %s53
      %p476 = scmp.eq.s32.totalorder %s475, 0
      %s478 = sadd.s32 %s477, 1
      %s479 = scalar_select %p476, %s477, %s478
      %p482 = pneg %p476
      %p483 = scmp.eq.s32.totalorder %s38, 3
      %p484 = por %p482, %p483
      %p485 = scmp.ne.s32.totalorder %s477, %s480
      %p486 = scmp.eq.s32.totalorder %s38, 0
      %p487 = por %p485, %p486
      %p488 = scmp.ne.s32.totalorder %s477, %s480
      %p489 = scmp.eq.s32.totalorder %s43, 3
      %p490 = por %p488, %p489
      %p491 = scmp.ne.s32.totalorder %s480, %s481
      %p492 = scmp.eq.s32.totalorder %s43, 0
      %p493 = por %p491, %p492
      %p494 = scmp.ne.s32.totalorder %s480, %s481
      %p495 = scmp.eq.s32.totalorder %s44, 3
      %p496 = por %p494, %p495
      %p498 = scmp.ne.s32.totalorder %s481, %s497
      %p499 = scmp.eq.s32.totalorder %s44, 0
      %p500 = por %p498, %p499
      %s501 = ssub.s32 %s45, %s57
      %p502 = scmp.eq.s32.totalorder %s501, 0
      %s504 = sadd.s32 %s503, 1
      %s505 = scalar_select %p502, %s503, %s504
      %p508 = pneg %p502
      %p509 = scmp.eq.s32.totalorder %s38, 3
      %p510 = por %p508, %p509
      %p511 = scmp.ne.s32.totalorder %s503, %s506
      %p512 = scmp.eq.s32.totalorder %s38, 0
      %p513 = por %p511, %p512
      %p514 = scmp.ne.s32.totalorder %s503, %s506
      %p515 = scmp.eq.s32.totalorder %s43, 3
      %p516 = por %p514, %p515
      %p517 = scmp.ne.s32.totalorder %s506, %s507
      %p518 = scmp.eq.s32.totalorder %s43, 0
      %p519 = por %p517, %p518
      %p520 = scmp.ne.s32.totalorder %s506, %s507
      %p521 = scmp.eq.s32.totalorder %s44, 3
      %p522 = por %p520, %p521
      %p524 = scmp.ne.s32.totalorder %s507, %s523
      %p525 = scmp.eq.s32.totalorder %s44, 0
      %p526 = por %p524, %p525
      %p527 = scmp.le.s32.totalorder 1, %s38
      %p528 = scmp.lt.s32.totalorder %s38, 5
      %p529 = pnand %p527, %p528
      %p530 = pneg %p529
      // Predicated region
      $region9: #{encoder_forward.1} parent=5 // pred_check
        _
      $region10: #{encoder_forward.1} parent=5 // pred_check_branch
        %532 = sbr.rel (%p529) target = $region12
      $region11: #{encoder_forward.1} parent=5 // pred_region
        %s533 = ssub.s32 %s38, 1
        // Predicated region
        $region13: #{encoder_forward.1} parent=11 // pred_check
          %p534 = pneg %p97
        $region14: #{encoder_forward.1} parent=11 // pred_check_branch
          %536 = sbr.rel (%p534) target = $region16
        $region15: #{encoder_forward.1} parent=11 // pred_region
          _
        $region16: #{encoder_forward.1} parent=11 // pred_fallthru
          _
        // Predicated region
        $region17: #{encoder_forward.1} parent=11 // pred_check
          %p537 = pneg %p118
        $region18: #{encoder_forward.1} parent=11 // pred_check_branch
          %539 = sbr.rel (%p537) target = $region20
        $region19: #{encoder_forward.1} parent=11 // pred_region
          %541 = vsyncadd [#allocation4], 0
          %s542 = sshll.u32 %s2, 4
          %s543 = int_to_ptr.hbm [resolvable:$true] %s542
          %s544 = sshll.u32 [#allocation3], 4
          %s545 = int_to_ptr.vmem [resolvable:$true] %s544
          %550 = dma.hbm_to_vmem [thread:$0]  %s543, 256, %s545, [#allocation4], 64, 64, 4
        $region20: #{encoder_forward.1} parent=11 // pred_fallthru
          _
        // Predicated region
        $region21: #{encoder_forward.1} parent=11 // pred_check
          %p551 = pneg %p139
        $region22: #{encoder_forward.1} parent=11 // pred_check_branch
          %553 = sbr.rel (%p551) target = $region24
        $region23: #{encoder_forward.1} parent=11 // pred_region
          _
        $region24: #{encoder_forward.1} parent=11 // pred_fallthru
          _
        // Predicated region
        $region25: #{encoder_forward.1} parent=11 // pred_check
          %p554 = pneg %p160
        $region26: #{encoder_forward.1} parent=11 // pred_check_branch
          %556 = sbr.rel (%p554) target = $region28
        $region27: #{encoder_forward.1} parent=11 // pred_region
          %558 = vsyncadd [#allocation7], 0
          %s560 = sshll.u32 %s4, 4
          %s561 = int_to_ptr.hbm [resolvable:$true] %s560
          %s562 = sshll.u32 [#allocation6], 4
          %s563 = int_to_ptr.vmem [resolvable:$true] %s562
          %565 = dma.hbm_to_vmem [thread:$0]  %s561, 16, %s563, [#allocation7]
        $region28: #{encoder_forward.1} parent=11 // pred_fallthru
          _
        // Predicated region
        $region29: #{encoder_forward.1} parent=11 // pred_check
          %p566 = pneg %p181
        $region30: #{encoder_forward.1} parent=11 // pred_check_branch
          %568 = sbr.rel (%p566) target = $region32
        $region31: #{encoder_forward.1} parent=11 // pred_region
          %570 = vsyncadd [#allocation7], 0
          %s572 = sshll.u32 %s5, 4
          %s573 = int_to_ptr.hbm [resolvable:$true] %s572
          %s574 = sshll.u32 [#allocation8], 4
          %s575 = int_to_ptr.vmem [resolvable:$true] %s574
          %577 = dma.hbm_to_vmem [thread:$0]  %s573, 16, %s575, [#allocation7]
        $region32: #{encoder_forward.1} parent=11 // pred_fallthru
          _
      $region12: #{encoder_forward.1} parent=5 // pred_fallthru
        _
      %p578 = scmp.lt.s32.totalorder %s38, 4
      // Predicated region
      $region33: #{encoder_forward.1} parent=5 // pred_check
        %p579 = pneg %p578
      $region34: #{encoder_forward.1} parent=5 // pred_check_branch
        %581 = sbr.rel (%p579) target = $region36
      $region35: #{encoder_forward.1} parent=5 // pred_region
        // Predicated region
        $region37: #{encoder_forward.1} parent=35 // pred_check
          %p582 = pneg %p70
        $region38: #{encoder_forward.1} parent=35 // pred_check_branch
          %584 = sbr.rel (%p582) target = $region40
        $region39: #{encoder_forward.1} parent=35 // pred_region
          %p585 = scmp.lt.s32.totalorder %s45, 1
          %s586 = scalar_select %p585, %s45, 1
          %s587 = smul.addr %s586, 8
          %s588 = scalar_lea.vmem %s0, %s587
        $region40: #{encoder_forward.1} parent=35 // pred_fallthru
          _
        // Predicated region
        $region41: #{encoder_forward.1} parent=35 // pred_check
          %p589 = pneg %p201
        $region42: #{encoder_forward.1} parent=35 // pred_check_branch
          %591 = sbr.rel (%p589) target = $region44
        $region43: #{encoder_forward.1} parent=35 // pred_region
          %p592 = scmp.lt.s32.totalorder %s46, 1
          %s593 = scalar_select %p592, %s46, 1
          %s594 = smul.addr %s593, 4
          %s595 = smul.addr %s594, 4
          %s596 = scalar_lea.vmem %s6, %s595
        $region44: #{encoder_forward.1} parent=35 // pred_fallthru
          _
        // Predicated region
        $region45: #{encoder_forward.1} parent=35 // pred_check
          %p597 = pneg %p227
        $region46: #{encoder_forward.1} parent=35 // pred_check_branch
          %599 = sbr.rel (%p597) target = $region48
        $region47: #{encoder_forward.1} parent=35 // pred_region
          %s600 = sand.u32 %s38, 1
          %s601 = scalar_lea.sflag [#allocation10], %s600
          %s602 = sand.u32 %s217, 1
          %s603 = scalar_lea.vmem [#allocation9], %s602
          %605 = vsyncadd %s601, 0
          %s606 = scalar_lea.hbm %s7, %s46
          %s608 = sshll.u32 %s606, 4
          %s609 = int_to_ptr.hbm [resolvable:$true] %s608
          %s610 = sshll.u32 %s603, 4
          %s611 = int_to_ptr.vmem [resolvable:$true] %s610
          %613 = dma.hbm_to_vmem [thread:$0]  %s609, 16, %s611, %s601
        $region48: #{encoder_forward.1} parent=35 // pred_fallthru
          _
        // Predicated region
        $region49: #{encoder_forward.1} parent=35 // pred_check
          %p614 = pneg %p253
        $region50: #{encoder_forward.1} parent=35 // pred_check_branch
          %616 = sbr.rel (%p614) target = $region52
        $region51: #{encoder_forward.1} parent=35 // pred_region
          %p617 = scmp.lt.s32.totalorder %s46, 1
          %s618 = scalar_select %p617, %s46, 1
          %s619 = smul.addr %s618, 4
          %s620 = smul.addr %s619, 4
          %s621 = scalar_lea.vmem %s8, %s620
        $region52: #{encoder_forward.1} parent=35 // pred_fallthru
          _
        // Predicated region
        $region53: #{encoder_forward.1} parent=35 // pred_check
          %p622 = pneg %p279
        $region54: #{encoder_forward.1} parent=35 // pred_check_branch
          %624 = sbr.rel (%p622) target = $region56
        $region55: #{encoder_forward.1} parent=35 // pred_region
          %s625 = sand.u32 %s38, 1
          %s626 = scalar_lea.sflag [#allocation10], %s625
          %s627 = sand.u32 %s269, 1
          %s628 = scalar_lea.vmem [#allocation11], %s627
          %630 = vsyncadd %s626, 0
          %s631 = scalar_lea.hbm %s9, %s46
          %s633 = sshll.u32 %s631, 4
          %s634 = int_to_ptr.hbm [resolvable:$true] %s633
          %s635 = sshll.u32 %s628, 4
          %s636 = int_to_ptr.vmem [resolvable:$true] %s635
          %638 = dma.hbm_to_vmem [thread:$0]  %s634, 16, %s636, %s626
        $region56: #{encoder_forward.1} parent=35 // pred_fallthru
          _
        // Predicated region
        $region57: #{encoder_forward.1} parent=35 // pred_check
          %p639 = pneg %p305
        $region58: #{encoder_forward.1} parent=35 // pred_check_branch
          %641 = sbr.rel (%p639) target = $region60
        $region59: #{encoder_forward.1} parent=35 // pred_region
          %p642 = scmp.lt.s32.totalorder %s46, 1
          %s643 = scalar_select %p642, %s46, 1
          %s644 = scalar_lea.vmem %s10, %s643
        $region60: #{encoder_forward.1} parent=35 // pred_fallthru
          _
        // Predicated region
        $region61: #{encoder_forward.1} parent=35 // pred_check
          %p645 = pneg %p331
        $region62: #{encoder_forward.1} parent=35 // pred_check_branch
          %647 = sbr.rel (%p645) target = $region64
        $region63: #{encoder_forward.1} parent=35 // pred_region
          %s648 = sand.u32 %s38, 1
          %s649 = scalar_lea.sflag [#allocation13], %s648
          %s650 = sand.u32 %s321, 1
          %s651 = scalar_lea.vmem [#allocation12], %s650
          %653 = vsyncadd %s649, 0
          %s654 = scalar_lea.hbm %s11, %s46
          %s656 = sshll.u32 %s654, 4
          %s657 = int_to_ptr.hbm [resolvable:$true] %s656
          %s658 = sshll.u32 %s651, 4
          %s659 = int_to_ptr.vmem [resolvable:$true] %s658
          %661 = dma.hbm_to_vmem [thread:$0]  %s657, 16, %s659, %s649
        $region64: #{encoder_forward.1} parent=35 // pred_fallthru
          _
        // Predicated region
        $region65: #{encoder_forward.1} parent=35 // pred_check
          %p662 = pneg %p357
        $region66: #{encoder_forward.1} parent=35 // pred_check_branch
          %664 = sbr.rel (%p662) target = $region68
        $region67: #{encoder_forward.1} parent=35 // pred_region
          %p665 = scmp.lt.s32.totalorder %s46, 1
          %s666 = scalar_select %p665, %s46, 1
          %s667 = smul.addr %s666, 4
          %s668 = smul.addr %s667, 4
          %s669 = scalar_lea.vmem %s12, %s668
        $region68: #{encoder_forward.1} parent=35 // pred_fallthru
          _
        // Predicated region
        $region69: #{encoder_forward.1} parent=35 // pred_check
          %p670 = pneg %p383
        $region70: #{encoder_forward.1} parent=35 // pred_check_branch
          %672 = sbr.rel (%p670) target = $region72
        $region71: #{encoder_forward.1} parent=35 // pred_region
          %s673 = sand.u32 %s38, 1
          %s674 = scalar_lea.sflag [#allocation13], %s673
          %s675 = sand.u32 %s373, 1
          %s676 = scalar_lea.vmem [#allocation14], %s675
          %678 = vsyncadd %s674, 0
          %s679 = scalar_lea.hbm %s13, %s46
          %s681 = sshll.u32 %s679, 4
          %s682 = int_to_ptr.hbm [resolvable:$true] %s681
          %s683 = sshll.u32 %s676, 4
          %s684 = int_to_ptr.vmem [resolvable:$true] %s683
          %686 = dma.hbm_to_vmem [thread:$0]  %s682, 16, %s684, %s674
        $region72: #{encoder_forward.1} parent=35 // pred_fallthru
          _
        // Predicated region
        $region73: #{encoder_forward.1} parent=35 // pred_check
          %p687 = pneg %p409
        $region74: #{encoder_forward.1} parent=35 // pred_check_branch
          %689 = sbr.rel (%p687) target = $region76
        $region75: #{encoder_forward.1} parent=35 // pred_region
          %p690 = scmp.lt.s32.totalorder %s46, 1
          %s691 = scalar_select %p690, %s46, 1
          %s692 = smul.addr %s691, 8
          %s693 = smul.addr %s692, 4
          %s694 = scalar_lea.vmem %s14, %s693
        $region76: #{encoder_forward.1} parent=35 // pred_fallthru
          _
        // Predicated region
        $region77: #{encoder_forward.1} parent=35 // pred_check
          %p695 = pneg %p435
        $region78: #{encoder_forward.1} parent=35 // pred_check_branch
          %697 = sbr.rel (%p695) target = $region80
        $region79: #{encoder_forward.1} parent=35 // pred_region
          %s698 = sand.u32 %s38, 1
          %s699 = scalar_lea.sflag [#allocation16], %s698
          %s700 = sand.u32 %s425, 1
          %s701 = scalar_lea.vmem [#allocation15], %s700
          %703 = vsyncadd %s699, 0
          %s704 = scalar_lea.hbm %s15, %s46
          %s706 = sshll.u32 %s704, 4
          %s707 = int_to_ptr.hbm [resolvable:$true] %s706
          %s708 = sshll.u32 %s701, 4
          %s709 = int_to_ptr.vmem [resolvable:$true] %s708
          %711 = dma.hbm_to_vmem [thread:$0]  %s707, 16, %s709, %s699
        $region80: #{encoder_forward.1} parent=35 // pred_fallthru
          _
        // Predicated region
        $region81: #{encoder_forward.1} parent=35 // pred_check
          %p712 = pneg %p461
        $region82: #{encoder_forward.1} parent=35 // pred_check_branch
          %714 = sbr.rel (%p712) target = $region84
        $region83: #{encoder_forward.1} parent=35 // pred_region
          %p715 = scmp.lt.s32.totalorder %s46, 1
          %s716 = scalar_select %p715, %s46, 1
          %s717 = scalar_lea.vmem %s16, %s716
        $region84: #{encoder_forward.1} parent=35 // pred_fallthru
          _
        // Predicated region
        $region85: #{encoder_forward.1} parent=35 // pred_check
          %p718 = pneg %p487
        $region86: #{encoder_forward.1} parent=35 // pred_check_branch
          %720 = sbr.rel (%p718) target = $region88
        $region87: #{encoder_forward.1} parent=35 // pred_region
          %s721 = sand.u32 %s38, 1
          %s722 = scalar_lea.sflag [#allocation16], %s721
          %s723 = sand.u32 %s477, 1
          %s724 = scalar_lea.vmem [#allocation17], %s723
          %726 = vsyncadd %s722, 0
          %s727 = scalar_lea.hbm %s17, %s46
          %s729 = sshll.u32 %s727, 4
          %s730 = int_to_ptr.hbm [resolvable:$true] %s729
          %s731 = sshll.u32 %s724, 4
          %s732 = int_to_ptr.vmem [resolvable:$true] %s731
          %734 = dma.hbm_to_vmem [thread:$0]  %s730, 16, %s732, %s722
        $region88: #{encoder_forward.1} parent=35 // pred_fallthru
          _
      $region36: #{encoder_forward.1} parent=5 // pred_fallthru
        _
      %p735 = scmp.le.s32.totalorder 1, %s38
      %p736 = scmp.lt.s32.totalorder %s38, 5
      %p737 = pnand %p735, %p736
      %p738 = pneg %p737
      // Predicated region
      $region89: #{encoder_forward.1} parent=5 // pred_check
        _
      $region90: #{encoder_forward.1} parent=5 // pred_check_branch
        %740 = sbr.rel (%p737) target = $region92
      $region91: #{encoder_forward.1} parent=5 // pred_region
        %s741 = ssub.s32 %s38, 1
        // Predicated region
        $region93: #{encoder_forward.1} parent=91 // pred_check
          %p742 = pneg %p118
        $region94: #{encoder_forward.1} parent=91 // pred_check_branch
          %744 = sbr.rel (%p742) target = $region96
        $region95: #{encoder_forward.1} parent=91 // pred_region
          %746 = dma.done [#allocation4], 256
        $region96: #{encoder_forward.1} parent=91 // pred_fallthru
          _
        // Predicated region
        $region97: #{encoder_forward.1} parent=91 // pred_check
          %p747 = pneg %p160
        $region98: #{encoder_forward.1} parent=91 // pred_check_branch
          %749 = sbr.rel (%p747) target = $region100
        $region99: #{encoder_forward.1} parent=91 // pred_region
          %751 = dma.done [#allocation7], 16
        $region100: #{encoder_forward.1} parent=91 // pred_fallthru
          _
        // Predicated region
        $region101: #{encoder_forward.1} parent=91 // pred_check
          %p752 = pneg %p181
        $region102: #{encoder_forward.1} parent=91 // pred_check_branch
          %754 = sbr.rel (%p752) target = $region104
        $region103: #{encoder_forward.1} parent=91 // pred_region
          %756 = dma.done [#allocation7], 16
        $region104: #{encoder_forward.1} parent=91 // pred_fallthru
          _
        %s757 = sand.u32 %s43, 1
        %s758 = scalar_lea.sflag [#allocation10], %s757
        %s759 = sand.u32 %s220, 1
        %s760 = scalar_lea.vmem [#allocation9], %s759
        // Predicated region
        $region105: #{encoder_forward.1} parent=91 // pred_check
          %p761 = pneg %p233
        $region106: #{encoder_forward.1} parent=91 // pred_check_branch
          %763 = sbr.rel (%p761) target = $region108
        $region107: #{encoder_forward.1} parent=91 // pred_region
          %765 = dma.done %s758, 16
        $region108: #{encoder_forward.1} parent=91 // pred_fallthru
          _
        %s766 = sand.u32 %s43, 1
        %s767 = scalar_lea.sflag [#allocation10], %s766
        %s768 = sand.u32 %s272, 1
        %s769 = scalar_lea.vmem [#allocation11], %s768
        // Predicated region
        $region109: #{encoder_forward.1} parent=91 // pred_check
          %p770 = pneg %p285
        $region110: #{encoder_forward.1} parent=91 // pred_check_branch
          %772 = sbr.rel (%p770) target = $region112
        $region111: #{encoder_forward.1} parent=91 // pred_region
          %774 = dma.done %s767, 16
        $region112: #{encoder_forward.1} parent=91 // pred_fallthru
          _
        %s775 = sand.u32 %s43, 1
        %s776 = scalar_lea.sflag [#allocation13], %s775
        %s777 = sand.u32 %s324, 1
        %s778 = scalar_lea.vmem [#allocation12], %s777
        // Predicated region
        $region113: #{encoder_forward.1} parent=91 // pred_check
          %p779 = pneg %p337
        $region114: #{encoder_forward.1} parent=91 // pred_check_branch
          %781 = sbr.rel (%p779) target = $region116
        $region115: #{encoder_forward.1} parent=91 // pred_region
          %783 = dma.done %s776, 16
        $region116: #{encoder_forward.1} parent=91 // pred_fallthru
          _
        %s784 = sand.u32 %s43, 1
        %s785 = scalar_lea.sflag [#allocation13], %s784
        %s786 = sand.u32 %s376, 1
        %s787 = scalar_lea.vmem [#allocation14], %s786
        // Predicated region
        $region117: #{encoder_forward.1} parent=91 // pred_check
          %p788 = pneg %p389
        $region118: #{encoder_forward.1} parent=91 // pred_check_branch
          %790 = sbr.rel (%p788) target = $region120
        $region119: #{encoder_forward.1} parent=91 // pred_region
          %792 = dma.done %s785, 16
        $region120: #{encoder_forward.1} parent=91 // pred_fallthru
          _
        %s793 = sand.u32 %s43, 1
        %s794 = scalar_lea.sflag [#allocation16], %s793
        %s795 = sand.u32 %s428, 1
        %s796 = scalar_lea.vmem [#allocation15], %s795
        // Predicated region
        $region121: #{encoder_forward.1} parent=91 // pred_check
          %p797 = pneg %p441
        $region122: #{encoder_forward.1} parent=91 // pred_check_branch
          %799 = sbr.rel (%p797) target = $region124
        $region123: #{encoder_forward.1} parent=91 // pred_region
          %801 = dma.done %s794, 16
        $region124: #{encoder_forward.1} parent=91 // pred_fallthru
          _
        %s802 = sand.u32 %s43, 1
        %s803 = scalar_lea.sflag [#allocation16], %s802
        %s804 = sand.u32 %s480, 1
        %s805 = scalar_lea.vmem [#allocation17], %s804
        // Predicated region
        $region125: #{encoder_forward.1} parent=91 // pred_check
          %p806 = pneg %p493
        $region126: #{encoder_forward.1} parent=91 // pred_check_branch
          %808 = sbr.rel (%p806) target = $region128
        $region127: #{encoder_forward.1} parent=91 // pred_region
          %810 = dma.done %s803, 16
        $region128: #{encoder_forward.1} parent=91 // pred_fallthru
          _
        %p811 = scmp.lt.s32.totalorder %s47, 1
        %s812 = scalar_select %p811, %s47, 1
        %s813 = smul.addr %s812, 8
        %s814 = scalar_lea.vmem %s0, %s813
        %p815 = pneg %p76
        %p816 = pneg %p73
        %p817 = pneg %p97
        %p818 = pneg %p94
        %p819 = pneg %p118
        %p820 = pneg %p115
        %p821 = pneg %p139
        %p822 = pneg %p136
        %p823 = pneg %p160
        %p824 = pneg %p157
        %p825 = pneg %p181
        %p826 = pneg %p178
        %p827 = scmp.lt.s32.totalorder %s48, 1
        %s828 = scalar_select %p827, %s48, 1
        %s829 = smul.addr %s828, 4
        %s830 = smul.addr %s829, 4
        %s831 = scalar_lea.vmem %s6, %s830
        %p832 = pneg %p207
        %p833 = pneg %p204
        %s834 = sand.u32 %s43, 1
        %s835 = scalar_lea.sflag [#allocation10], %s834
        %s836 = sand.u32 %s220, 1
        %s837 = scalar_lea.vmem [#allocation9], %s836
        %p838 = pneg %p233
        %p839 = pneg %p230
        %p840 = scmp.lt.s32.totalorder %s48, 1
        %s841 = scalar_select %p840, %s48, 1
        %s842 = smul.addr %s841, 4
        %s843 = smul.addr %s842, 4
        %s844 = scalar_lea.vmem %s8, %s843
        %p845 = pneg %p259
        %p846 = pneg %p256
        %s847 = sand.u32 %s43, 1
        %s848 = scalar_lea.sflag [#allocation10], %s847
        %s849 = sand.u32 %s272, 1
        %s850 = scalar_lea.vmem [#allocation11], %s849
        %p851 = pneg %p285
        %p852 = pneg %p282
        %p853 = scmp.lt.s32.totalorder %s48, 1
        %s854 = scalar_select %p853, %s48, 1
        %s855 = scalar_lea.vmem %s10, %s854
        %p856 = pneg %p311
        %p857 = pneg %p308
        %s858 = sand.u32 %s43, 1
        %s859 = scalar_lea.sflag [#allocation13], %s858
        %s860 = sand.u32 %s324, 1
        %s861 = scalar_lea.vmem [#allocation12], %s860
        %p862 = pneg %p337
        %p863 = pneg %p334
        %p864 = scmp.lt.s32.totalorder %s48, 1
        %s865 = scalar_select %p864, %s48, 1
        %s866 = smul.addr %s865, 4
        %s867 = smul.addr %s866, 4
        %s868 = scalar_lea.vmem %s12, %s867
        %p869 = pneg %p363
        %p870 = pneg %p360
        %s871 = sand.u32 %s43, 1
        %s872 = scalar_lea.sflag [#allocation13], %s871
        %s873 = sand.u32 %s376, 1
        %s874 = scalar_lea.vmem [#allocation14], %s873
        %p875 = pneg %p389
        %p876 = pneg %p386
        %p877 = scmp.lt.s32.totalorder %s48, 1
        %s878 = scalar_select %p877, %s48, 1
        %s879 = smul.addr %s878, 8
        %s880 = smul.addr %s879, 4
        %s881 = scalar_lea.vmem %s14, %s880
        %p882 = pneg %p415
        %p883 = pneg %p412
        %s884 = sand.u32 %s43, 1
        %s885 = scalar_lea.sflag [#allocation16], %s884
        %s886 = sand.u32 %s428, 1
        %s887 = scalar_lea.vmem [#allocation15], %s886
        %p888 = pneg %p441
        %p889 = pneg %p438
        %p890 = scmp.lt.s32.totalorder %s48, 1
        %s891 = scalar_select %p890, %s48, 1
        %s892 = scalar_lea.vmem %s16, %s891
        %p893 = pneg %p467
        %p894 = pneg %p464
        %s895 = sand.u32 %s43, 1
        %s896 = scalar_lea.sflag [#allocation16], %s895
        %s897 = sand.u32 %s480, 1
        %s898 = scalar_lea.vmem [#allocation17], %s897
        %p899 = pneg %p493
        %p900 = pneg %p490
        %p901 = pneg %p519
        %p902 = pneg %p516
        %s903 = sand.u32 %s506, 1
        %s904 = scalar_lea.sflag [#allocation5], %s903
        %s905 = sand.u32 %s506, 1
        %s906 = smul.addr %s905, 8
        %s907 = scalar_lea.vmem [#allocation18], %s906
        %p908 = scmp.lt.s32.totalorder %s47, 1
        %s909 = scalar_select %p908, %s47, 1
        %s910 = smul.addr %s909, 8
        %s911 = scalar_lea.vmem %s0, %s910
        %p912 = scmp.lt.s32.totalorder %s48, 1
        %s913 = scalar_select %p912, %s48, 1
        %s914 = smul.addr %s913, 4
        %s915 = smul.addr %s914, 4
        %s916 = scalar_lea.vmem %s6, %s915
        %p917 = scmp.lt.s32.totalorder %s48, 1
        %s918 = scalar_select %p917, %s48, 1
        %s919 = smul.addr %s918, 4
        %s920 = smul.addr %s919, 4
        %s921 = scalar_lea.vmem %s8, %s920
        %p922 = scmp.lt.s32.totalorder %s48, 1
        %s923 = scalar_select %p922, %s48, 1
        %s924 = scalar_lea.vmem %s10, %s923
        %p925 = scmp.lt.s32.totalorder %s48, 1
        %s926 = scalar_select %p925, %s48, 1
        %s927 = smul.addr %s926, 4
        %s928 = smul.addr %s927, 4
        %s929 = scalar_lea.vmem %s12, %s928
        %p930 = scmp.lt.s32.totalorder %s48, 1
        %s931 = scalar_select %p930, %s48, 1
        %s932 = smul.addr %s931, 8
        %s933 = smul.addr %s932, 4
        %s934 = scalar_lea.vmem %s14, %s933
        %p935 = scmp.lt.s32.totalorder %s48, 1
        %s936 = scalar_select %p935, %s48, 1
        %s937 = scalar_lea.vmem %s16, %s936
        %p939 = scmp.eq.s32.totalorder %s48, 0
        // Predicated region
        $region129: #{encoder_forward.1} parent=91 // pred_check
          %p940 = pneg %p939
        $region130: #{encoder_forward.1} parent=91 // pred_check_branch
          %942 = sbr.rel (%p940) target = $region132
        $region131: #{encoder_forward.1} parent=91 // pred_region
          %v943 = vld [vmem:[%s911] sm:$0xff]
          %v944 = vpack.c.bf16 %v943, %v943
          %v945 = vld [vmem:[#allocation3] sm:$0xf]
          %v946 = vld [vmem:[#allocation3 + $0x4] sm:$0xf]
          %v947 = vld [vmem:[#allocation3 + $0x8] sm:$0xf]
          %v948 = vld [vmem:[#allocation3 + $0xc] sm:$0xf]
          %v949 = vld [vmem:[%s3] sm:$0x1]
          %v951 = vperm.slane %v949, 0
          %v957 = vunpack.c.l.b16 %v945
          %v958 = vunpack.c.l.b16 %v946
          %v959 = vunpack.c.l.b16 %v947
          %v960 = vunpack.c.l.b16 %v948
          %v961 = vpack.c.b16 %v958, %v957
          %v962 = vpack.c.b16 %v960, %v959
          %vm965 = vcmask 261120
          %v967 = vsel %vm965, %v944, 0
          %969 = vmatpush.bf16.msra.mxu0 0
          %970 = vmatpush.bf16.msra.mxu0 0
          %971 = vmatpush.bf16.msra.mxu0 0
          %972 = vmatpush.bf16.msra.mxu0 0
          %973 = vmatpush.bf16.msra.mxu0 0
          %974 = vmatpush.bf16.msra.mxu0 0
          %975 = vmatpush.bf16.msra.mxu0 %v962
          %976 = vmatpush.bf16.msra.mxu0 %v961
          %977 = vmatmul.bf16.gmra.mxu0 %v967
          %v978 = vpop.f32.mrf.mxu0
          %v979 = vadd.f32 %v951, %v978
          %v980 = vpop.f32.mrf.mxu0
          %981 = vdwg.mxu0
          %v982 = vld [vmem:[#allocation6] sm:$0x1]
          %v983 = vld [vmem:[#allocation8] sm:$0x1]
          %v984 = vsel %vm965, %v979, 0.0
          %985 = vadd.xlane.f32.xlu0 %v984
          %v986 = vpop.xlane.xlu0 %985
          %v987 = vrcp.pop 32.0
          %v988 = vmul.f32 32.0, %v987
          %v989 = vsub.f32 1.0, %v988
          %v990 = vmul.f32 %v987, %v989
          %v991 = vadd.f32 %v987, %v990
          %vm992 = vweird.f32 %v987
          %v993 = vsel %vm992, %v987, %v991
          %v994 = vmul.f32 %v986, %v993
          %v995 = vsub.f32 %v979, %v994
          %v996 = vmul.f32 %v995, %v995
          %v997 = vsel %vm965, %v996, 0.0
          %998 = vadd.xlane.f32.xlu0 %v997
          %v999 = vpop.xlane.xlu0 %998
          %v1000 = vmul.f32 %v999, %v993
          %v1001 = vadd.f32 %v1000, 1e-05
          %v1002 = vrsqrt.pop %v1001
          %v1003 = vmul.f32 %v1002, %v1001
          %v1004 = vmul.f32 %v1003, %v1002
          %v1005 = vmul.f32 0.5, %v1004
          %v1006 = vsub.f32 1.5, %v1005
          %v1007 = vmul.f32 %v1002, %v1006
          %vm1008 = vweird.f32 %v1001
          %vm1009 = vweird.f32 %v1002
          %vm1010 = vmor %vm1008, %vm1009
          %v1011 = vsel %vm1010, %v1002, %v1007
          %v1012 = vmul.f32 %v995, %v1011
          %v1014 = vperm.slane %v982, 0
          %v1016 = vmul.f32 %v1012, %v1014
          %v1018 = vperm.slane %v983, 0
          %v1020 = vadd.f32 %v1016, %v1018
          %v1021 = vld [vmem:[%s1] sm:$0xff]
          %v1022 = vadd.f32 %v1020, %v1021
          %1023 = vst.msk [vmem:[#allocation2] sm:$0xff] %vm965, %v1022
        $region132: #{encoder_forward.1} parent=91 // pred_fallthru
          _
        %v1024 = vld [vmem:[#allocation2] sm:$0xff]
        %v1025 = vpack.c.bf16 %v1024, %v1024
        %v1026 = vld [vmem:[%s916] sm:$0xf]
        %v1027 = vld [vmem:[%s916 + $0x4] sm:$0xf]
        %v1028 = vld [vmem:[%s916 + $0x8] sm:$0xf]
        %v1029 = vld [vmem:[%s916 + $0xc] sm:$0xf]
        %v1030 = vld [vmem:[%s760] sm:$0x1]
        %v1032 = vperm.slane %v1030, 0
        %v1038 = vunpack.c.l.b16 %v1026
        %v1039 = vunpack.c.l.b16 %v1027
        %v1040 = vunpack.c.l.b16 %v1028
        %v1041 = vunpack.c.l.b16 %v1029
        %v1042 = vpack.c.b16 %v1039, %v1038
        %v1043 = vpack.c.b16 %v1041, %v1040
        %vm1046 = vcmask 261120
        %v1048 = vsel %vm1046, %v1025, 0
        %1050 = vmatpush.bf16.msra.mxu0 0
        %1051 = vmatpush.bf16.msra.mxu0 0
        %1052 = vmatpush.bf16.msra.mxu0 0
        %1053 = vmatpush.bf16.msra.mxu0 0
        %1054 = vmatpush.bf16.msra.mxu0 0
        %1055 = vmatpush.bf16.msra.mxu0 0
        %1056 = vmatpush.bf16.msra.mxu0 %v1043
        %1057 = vmatpush.bf16.msra.mxu0 %v1042
        %1058 = vmatmul.bf16.gmra.mxu0 %v1048
        %v1059 = vpop.f32.mrf.mxu0
        %v1060 = vadd.f32 %v1032, %v1059
        %v1061 = vpop.f32.mrf.mxu0
        %1062 = vdwg.mxu0
        %v1063 = vmul.f32 %v1060, 0.35355338
        %v1064 = vpack.c.bf16 %v1063, %v1063
        %v1065 = vpack.c.bf16 %v1060, %v1060
        %1067 = vrot.lane.b32.xlu0 %v1065, 96
        %v1068 = vpop.permute.xlu0 %1067
        %vm1069 = vcmask 64512
        %v1071 = vsel %vm1069, %v1064, 0
        %v1074 = vsel %vm1069, %v1068, 0
        %1076 = vmatpush.bf16.xpose.msra.mxu0 0
        %1077 = vmatpush.bf16.xpose.msra.mxu0 0
        %1078 = vmatpush.bf16.xpose.msra.mxu0 0
        %1079 = vmatpush.bf16.xpose.msra.mxu0 0
        %1080 = vmatpush.bf16.xpose.msra.mxu0 0
        %1081 = vmatpush.bf16.xpose.msra.mxu0 0
        %1082 = vmatpush.bf16.xpose.msra.mxu0 0
        %1083 = vmatpush.bf16.xpose.msra.mxu0 %v1074
        %1084 = vmatmul.bf16.gmra.mxu0 %v1071
        %v1085 = vpop.f32.mrf.mxu0
        %v1086 = vadd.f32 0.0, %v1085
        %v1087 = vpop.f32.mrf.mxu0
        %1088 = vdwg.mxu0
        %v1089 = vsel %vm1069, %v1086, -inf
        %1090 = vmax.xlane.f32.xlu0 %v1089
        %v1091 = vpop.xlane.xlu0 %1090
        %v1092 = vsub.f32 %v1086, %v1091
        %v1093 = vmul.f32 %v1092, 1.442695
        %v1094 = vpow.pop %v1093
        %v1095 = vsel %vm1069, %v1094, 0.0
        %1096 = vadd.xlane.f32.xlu0 %v1095
        %v1097 = vpop.xlane.xlu0 %1096
        %v1098 = vrcp.pop %v1097
        %v1099 = vmul.f32 %v1097, %v1098
        %v1100 = vsub.f32 1.0, %v1099
        %v1101 = vmul.f32 %v1098, %v1100
        %v1102 = vadd.f32 %v1098, %v1101
        %vm1103 = vweird.f32 %v1097
        %vm1104 = vweird.f32 %v1098
        %vm1105 = vmor %vm1103, %vm1104
        %v1106 = vsel %vm1105, %v1098, %v1102
        %v1107 = vand.u32 2147483647, %v1097
        %vm1108 = vcmp.eq.f32.partialorder %v1107, 8.507059e+37
        %v1109 = vand.u32 %v1097, 2147483648
        %v1110 = vor.u32 1.1754944e-38, %v1109
        %v1111 = vsel %vm1108, %v1110, %v1106
        %v1112 = vmul.f32 %v1094, %v1111
        %v1113 = vpack.c.bf16 %v1112, %v1112
        %1114 = vrot.lane.b32.xlu0 %v1065, 64
        %v1115 = vpop.permute.xlu0 %1114
        %v1117 = vsel %vm1069, %v1113, 0
        %vm1119 = vcmask 1043456
        %v1121 = vsel %vm1119, %v1115, 0
        %1123 = vmatpush.bf16.msra.mxu0 0
        %1124 = vmatpush.bf16.msra.mxu0 0
        %1125 = vmatpush.bf16.msra.mxu0 0
        %1126 = vmatpush.bf16.msra.mxu0 0
        %1127 = vmatpush.bf16.msra.mxu0 0
        %1128 = vmatpush.bf16.msra.mxu0 0
        %1129 = vmatpush.bf16.msra.mxu0 0
        %1130 = vmatpush.bf16.msra.mxu0 %v1121
        %1131 = vmatmul.bf16.gmra.mxu0 %v1117
        %v1132 = vpop.f32.mrf.mxu0
        %v1133 = vadd.f32 0.0, %v1132
        %v1134 = vpop.f32.mrf.mxu0
        %1135 = vdwg.mxu0
        %1137 = vrot.lane.b32.xlu0 %v1064, 120
        %v1138 = vpop.permute.xlu0 %1137
        %1139 = vrot.lane.b32.xlu0 %v1065, 88
        %v1140 = vpop.permute.xlu0 %1139
        %v1142 = vsel %vm1069, %v1138, 0
        %v1145 = vsel %vm1069, %v1140, 0
        %1147 = vmatpush.bf16.xpose.msra.mxu0 0
        %1148 = vmatpush.bf16.xpose.msra.mxu0 0
        %1149 = vmatpush.bf16.xpose.msra.mxu0 0
        %1150 = vmatpush.bf16.xpose.msra.mxu0 0
        %1151 = vmatpush.bf16.xpose.msra.mxu0 0
        %1152 = vmatpush.bf16.xpose.msra.mxu0 0
        %1153 = vmatpush.bf16.xpose.msra.mxu0 0
        %1154 = vmatpush.bf16.xpose.msra.mxu0 %v1145
        %1155 = vmatmul.bf16.gmra.mxu0 %v1142
        %v1156 = vpop.f32.mrf.mxu0
        %v1157 = vadd.f32 0.0, %v1156
        %v1158 = vpop.f32.mrf.mxu0
        %1159 = vdwg.mxu0
        %v1160 = vsel %vm1069, %v1157, -inf
        %1161 = vmax.xlane.f32.xlu0 %v1160
        %v1162 = vpop.xlane.xlu0 %1161
        %v1163 = vsub.f32 %v1157, %v1162
        %v1164 = vmul.f32 %v1163, 1.442695
        %v1165 = vpow.pop %v1164
        %v1166 = vsel %vm1069, %v1165, 0.0
        %1167 = vadd.xlane.f32.xlu0 %v1166
        %v1168 = vpop.xlane.xlu0 %1167
        %v1169 = vrcp.pop %v1168
        %v1170 = vmul.f32 %v1168, %v1169
        %v1171 = vsub.f32 1.0, %v1170
        %v1172 = vmul.f32 %v1169, %v1171
        %v1173 = vadd.f32 %v1169, %v1172
        %vm1174 = vweird.f32 %v1168
        %vm1175 = vweird.f32 %v1169
        %vm1176 = vmor %vm1174, %vm1175
        %v1177 = vsel %vm1176, %v1169, %v1173
        %v1178 = vand.u32 2147483647, %v1168
        %vm1179 = vcmp.eq.f32.partialorder %v1178, 8.507059e+37
        %v1180 = vand.u32 %v1168, 2147483648
        %v1181 = vor.u32 1.1754944e-38, %v1180
        %v1182 = vsel %vm1179, %v1181, %v1177
        %v1183 = vmul.f32 %v1165, %v1182
        %v1184 = vpack.c.bf16 %v1183, %v1183
        %1185 = vrot.lane.b32.xlu0 %v1065, 56
        %v1186 = vpop.permute.xlu0 %1185
        %v1188 = vsel %vm1069, %v1184, 0
        %v1191 = vsel %vm1119, %v1186, 0
        %1193 = vmatpush.bf16.msra.mxu0 0
        %1194 = vmatpush.bf16.msra.mxu0 0
        %1195 = vmatpush.bf16.msra.mxu0 0
        %1196 = vmatpush.bf16.msra.mxu0 0
        %1197 = vmatpush.bf16.msra.mxu0 0
        %1198 = vmatpush.bf16.msra.mxu0 0
        %1199 = vmatpush.bf16.msra.mxu0 0
        %1200 = vmatpush.bf16.msra.mxu0 %v1191
        %1201 = vmatmul.bf16.gmra.mxu0 %v1188
        %v1202 = vpop.f32.mrf.mxu0
        %v1203 = vadd.f32 0.0, %v1202
        %v1204 = vpop.f32.mrf.mxu0
        %1205 = vdwg.mxu0
        %1206 = vrot.lane.b32.xlu0 %v1064, 112
        %v1207 = vpop.permute.xlu0 %1206
        %1208 = vrot.lane.b32.xlu0 %v1065, 80
        %v1209 = vpop.permute.xlu0 %1208
        %v1211 = vsel %vm1069, %v1207, 0
        %v1214 = vsel %vm1069, %v1209, 0
        %1216 = vmatpush.bf16.xpose.msra.mxu0 0
        %1217 = vmatpush.bf16.xpose.msra.mxu0 0
        %1218 = vmatpush.bf16.xpose.msra.mxu0 0
        %1219 = vmatpush.bf16.xpose.msra.mxu0 0
        %1220 = vmatpush.bf16.xpose.msra.mxu0 0
        %1221 = vmatpush.bf16.xpose.msra.mxu0 0
        %1222 = vmatpush.bf16.xpose.msra.mxu0 0
        %1223 = vmatpush.bf16.xpose.msra.mxu0 %v1214
        %1224 = vmatmul.bf16.gmra.mxu0 %v1211
        %v1225 = vpop.f32.mrf.mxu0
        %v1226 = vadd.f32 0.0, %v1225
        %v1227 = vpop.f32.mrf.mxu0
        %1228 = vdwg.mxu0
        %v1229 = vsel %vm1069, %v1226, -inf
        %1230 = vmax.xlane.f32.xlu0 %v1229
        %v1231 = vpop.xlane.xlu0 %1230
        %v1232 = vsub.f32 %v1226, %v1231
        %v1233 = vmul.f32 %v1232, 1.442695
        %v1234 = vpow.pop %v1233
        %v1235 = vsel %vm1069, %v1234, 0.0
        %1236 = vadd.xlane.f32.xlu0 %v1235
        %v1237 = vpop.xlane.xlu0 %1236
        %v1238 = vrcp.pop %v1237
        %v1239 = vmul.f32 %v1237, %v1238
        %v1240 = vsub.f32 1.0, %v1239
        %v1241 = vmul.f32 %v1238, %v1240
        %v1242 = vadd.f32 %v1238, %v1241
        %vm1243 = vweird.f32 %v1237
        %vm1244 = vweird.f32 %v1238
        %vm1245 = vmor %vm1243, %vm1244
        %v1246 = vsel %vm1245, %v1238, %v1242
        %v1247 = vand.u32 2147483647, %v1237
        %vm1248 = vcmp.eq.f32.partialorder %v1247, 8.507059e+37
        %v1249 = vand.u32 %v1237, 2147483648
        %v1250 = vor.u32 1.1754944e-38, %v1249
        %v1251 = vsel %vm1248, %v1250, %v1246
        %v1252 = vmul.f32 %v1234, %v1251
        %v1253 = vpack.c.bf16 %v1252, %v1252
        %1254 = vrot.lane.b32.xlu0 %v1065, 48
        %v1255 = vpop.permute.xlu0 %1254
        %v1257 = vsel %vm1069, %v1253, 0
        %v1260 = vsel %vm1119, %v1255, 0
        %1262 = vmatpush.bf16.msra.mxu0 0
        %1263 = vmatpush.bf16.msra.mxu0 0
        %1264 = vmatpush.bf16.msra.mxu0 0
        %1265 = vmatpush.bf16.msra.mxu0 0
        %1266 = vmatpush.bf16.msra.mxu0 0
        %1267 = vmatpush.bf16.msra.mxu0 0
        %1268 = vmatpush.bf16.msra.mxu0 0
        %1269 = vmatpush.bf16.msra.mxu0 %v1260
        %1270 = vmatmul.bf16.gmra.mxu0 %v1257
        %v1271 = vpop.f32.mrf.mxu0
        %v1272 = vadd.f32 0.0, %v1271
        %v1273 = vpop.f32.mrf.mxu0
        %1274 = vdwg.mxu0
        %1275 = vrot.lane.b32.xlu0 %v1064, 104
        %v1276 = vpop.permute.xlu0 %1275
        %1277 = vrot.lane.b32.xlu0 %v1065, 72
        %v1278 = vpop.permute.xlu0 %1277
        %v1280 = vsel %vm1069, %v1276, 0
        %v1283 = vsel %vm1069, %v1278, 0
        %1285 = vmatpush.bf16.xpose.msra.mxu0 0
        %1286 = vmatpush.bf16.xpose.msra.mxu0 0
        %1287 = vmatpush.bf16.xpose.msra.mxu0 0
        %1288 = vmatpush.bf16.xpose.msra.mxu0 0
        %1289 = vmatpush.bf16.xpose.msra.mxu0 0
        %1290 = vmatpush.bf16.xpose.msra.mxu0 0
        %1291 = vmatpush.bf16.xpose.msra.mxu0 0
        %1292 = vmatpush.bf16.xpose.msra.mxu0 %v1283
        %1293 = vmatmul.bf16.gmra.mxu0 %v1280
        %v1294 = vpop.f32.mrf.mxu0
        %v1295 = vadd.f32 0.0, %v1294
        %v1296 = vpop.f32.mrf.mxu0
        %1297 = vdwg.mxu0
        %v1298 = vsel %vm1069, %v1295, -inf
        %1299 = vmax.xlane.f32.xlu0 %v1298
        %v1300 = vpop.xlane.xlu0 %1299
        %v1301 = vsub.f32 %v1295, %v1300
        %v1302 = vmul.f32 %v1301, 1.442695
        %v1303 = vpow.pop %v1302
        %v1304 = vsel %vm1069, %v1303, 0.0
        %1305 = vadd.xlane.f32.xlu0 %v1304
        %v1306 = vpop.xlane.xlu0 %1305
        %v1307 = vrcp.pop %v1306
        %v1308 = vmul.f32 %v1306, %v1307
        %v1309 = vsub.f32 1.0, %v1308
        %v1310 = vmul.f32 %v1307, %v1309
        %v1311 = vadd.f32 %v1307, %v1310
        %vm1312 = vweird.f32 %v1306
        %vm1313 = vweird.f32 %v1307
        %vm1314 = vmor %vm1312, %vm1313
        %v1315 = vsel %vm1314, %v1307, %v1311
        %v1316 = vand.u32 2147483647, %v1306
        %vm1317 = vcmp.eq.f32.partialorder %v1316, 8.507059e+37
        %v1318 = vand.u32 %v1306, 2147483648
        %v1319 = vor.u32 1.1754944e-38, %v1318
        %v1320 = vsel %vm1317, %v1319, %v1315
        %v1321 = vmul.f32 %v1303, %v1320
        %v1322 = vpack.c.bf16 %v1321, %v1321
        %1323 = vrot.lane.b32.xlu0 %v1065, 40
        %v1324 = vpop.permute.xlu0 %1323
        %v1326 = vsel %vm1069, %v1322, 0
        %v1329 = vsel %vm1119, %v1324, 0
        %1331 = vmatpush.bf16.msra.mxu0 0
        %1332 = vmatpush.bf16.msra.mxu0 0
        %1333 = vmatpush.bf16.msra.mxu0 0
        %1334 = vmatpush.bf16.msra.mxu0 0
        %1335 = vmatpush.bf16.msra.mxu0 0
        %1336 = vmatpush.bf16.msra.mxu0 0
        %1337 = vmatpush.bf16.msra.mxu0 0
        %1338 = vmatpush.bf16.msra.mxu0 %v1329
        %1339 = vmatmul.bf16.gmra.mxu0 %v1326
        %v1340 = vpop.f32.mrf.mxu0
        %v1341 = vadd.f32 0.0, %v1340
        %v1342 = vpop.f32.mrf.mxu0
        %1343 = vdwg.mxu0
        %1345 = vrot.lane.b32.xlu0 %v1203, 8
        %v1346 = vpop.permute.xlu0 %1345
        %1349 = vrot.lane.b32.xlu0 %v1272, 16
        %v1350 = vpop.permute.xlu0 %1349
        %1353 = vrot.lane.b32.xlu0 %v1341, 24
        %v1354 = vpop.permute.xlu0 %1353
        %v1356 = vsel %vm1069, %v1133, %v1346
        %vm1357 = vcmask 130048
        %v1358 = vsel %vm1357, %v1356, %v1350
        %vm1359 = vcmask 195584
        %v1360 = vsel %vm1359, %v1358, %v1354
        %v1361 = vpack.c.bf16 %v1360, %v1360
        %v1362 = vld [vmem:[%s921] sm:$0xf]
        %v1363 = vld [vmem:[%s921 + $0x4] sm:$0xf]
        %v1364 = vld [vmem:[%s921 + $0x8] sm:$0xf]
        %v1365 = vld [vmem:[%s921 + $0xc] sm:$0xf]
        %v1366 = vld [vmem:[%s769] sm:$0x1]
        %v1368 = vperm.slane %v1366, 0
        %v1374 = vunpack.c.l.b16 %v1362
        %v1375 = vunpack.c.l.b16 %v1363
        %v1376 = vunpack.c.l.b16 %v1364
        %v1377 = vunpack.c.l.b16 %v1365
        %v1378 = vpack.c.b16 %v1375, %v1374
        %v1379 = vpack.c.b16 %v1377, %v1376
        %v1383 = vsel %vm1046, %v1361, 0
        %1385 = vmatpush.bf16.msra.mxu0 0
        %1386 = vmatpush.bf16.msra.mxu0 0
        %1387 = vmatpush.bf16.msra.mxu0 0
        %1388 = vmatpush.bf16.msra.mxu0 0
        %1389 = vmatpush.bf16.msra.mxu0 0
        %1390 = vmatpush.bf16.msra.mxu0 0
        %1391 = vmatpush.bf16.msra.mxu0 %v1379
        %1392 = vmatpush.bf16.msra.mxu0 %v1378
        %1393 = vmatmul.bf16.gmra.mxu0 %v1383
        %v1394 = vpop.f32.mrf.mxu0
        %v1395 = vadd.f32 %v1368, %v1394
        %v1396 = vpop.f32.mrf.mxu0
        %1397 = vdwg.mxu0
        %v1398 = vadd.f32 %v1024, %v1395
        %v1399 = vld [vmem:[%s924] sm:$0x1]
        %v1400 = vld [vmem:[%s778] sm:$0x1]
        %v1401 = vsel %vm1046, %v1398, 0.0
        %1402 = vadd.xlane.f32.xlu0 %v1401
        %v1403 = vpop.xlane.xlu0 %1402
        %v1404 = vrcp.pop 32.0
        %v1405 = vmul.f32 32.0, %v1404
        %v1406 = vsub.f32 1.0, %v1405
        %v1407 = vmul.f32 %v1404, %v1406
        %v1408 = vadd.f32 %v1404, %v1407
        %vm1409 = vweird.f32 %v1404
        %v1410 = vsel %vm1409, %v1404, %v1408
        %v1411 = vmul.f32 %v1403, %v1410
        %v1412 = vsub.f32 %v1398, %v1411
        %v1413 = vmul.f32 %v1412, %v1412
        %v1414 = vsel %vm1046, %v1413, 0.0
        %1415 = vadd.xlane.f32.xlu0 %v1414
        %v1416 = vpop.xlane.xlu0 %1415
        %v1417 = vmul.f32 %v1416, %v1410
        %v1418 = vadd.f32 %v1417, 1e-05
        %v1419 = vrsqrt.pop %v1418
        %v1420 = vmul.f32 %v1419, %v1418
        %v1421 = vmul.f32 %v1420, %v1419
        %v1422 = vmul.f32 0.5, %v1421
        %v1423 = vsub.f32 1.5, %v1422
        %v1424 = vmul.f32 %v1419, %v1423
        %vm1425 = vweird.f32 %v1418
        %vm1426 = vweird.f32 %v1419
        %vm1427 = vmor %vm1425, %vm1426
        %v1428 = vsel %vm1427, %v1419, %v1424
        %v1429 = vmul.f32 %v1412, %v1428
        %v1431 = vperm.slane %v1399, 0
        %v1433 = vmul.f32 %v1429, %v1431
        %v1435 = vperm.slane %v1400, 0
        %v1437 = vadd.f32 %v1433, %v1435
        %v1438 = vpack.c.bf16 %v1437, %v1437
        %v1439 = vld [vmem:[%s929] sm:$0xf]
        %v1440 = vld [vmem:[%s929 + $0x4] sm:$0xf]
        %v1441 = vld [vmem:[%s929 + $0x8] sm:$0xf]
        %v1442 = vld [vmem:[%s929 + $0xc] sm:$0xf]
        %v1443 = vld [vmem:[%s787] sm:$0x1]
        %v1445 = vperm.slane %v1443, 0
        %v1451 = vunpack.c.l.b16 %v1439
        %v1452 = vunpack.c.l.b16 %v1440
        %v1453 = vunpack.c.l.b16 %v1441
        %v1454 = vunpack.c.l.b16 %v1442
        %v1455 = vpack.c.b16 %v1452, %v1451
        %v1456 = vpack.c.b16 %v1454, %v1453
        %v1460 = vsel %vm1046, %v1438, 0
        %1462 = vmatpush.bf16.msra.mxu0 0
        %1463 = vmatpush.bf16.msra.mxu0 0
        %1464 = vmatpush.bf16.msra.mxu0 0
        %1465 = vmatpush.bf16.msra.mxu0 0
        %1466 = vmatpush.bf16.msra.mxu0 0
        %1467 = vmatpush.bf16.msra.mxu0 0
        %1468 = vmatpush.bf16.msra.mxu0 %v1456
        %1469 = vmatpush.bf16.msra.mxu0 %v1455
        %1470 = vmatmul.bf16.gmra.mxu0 %v1460
        %v1471 = vpop.f32.mrf.mxu0
        %v1472 = vadd.f32 %v1445, %v1471
        %v1473 = vpop.f32.mrf.mxu0
        %1474 = vdwg.mxu0
        %v1475 = vmax.f32 %v1472, 0.0
        %v1476 = vpack.c.bf16 %v1475, %v1475
        %v1477 = vld [vmem:[%s934] sm:$0xf]
        %v1478 = vld [vmem:[%s934 + $0x4] sm:$0xf]
        %v1479 = vld [vmem:[%s934 + $0x8] sm:$0xf]
        %v1480 = vld [vmem:[%s934 + $0xc] sm:$0xf]
        %v1481 = vld [vmem:[%s934 + $0x10] sm:$0xf]
        %v1482 = vld [vmem:[%s934 + $0x14] sm:$0xf]
        %v1483 = vld [vmem:[%s934 + $0x18] sm:$0xf]
        %v1484 = vld [vmem:[%s934 + $0x1c] sm:$0xf]
        %v1485 = vld [vmem:[%s796] sm:$0x1]
        %v1487 = vperm.slane %v1485, 0
        %v1497 = vunpack.c.l.b16 %v1477
        %v1498 = vunpack.c.l.b16 %v1478
        %v1499 = vunpack.c.l.b16 %v1479
        %v1500 = vunpack.c.l.b16 %v1480
        %v1501 = vunpack.c.l.b16 %v1481
        %v1502 = vunpack.c.l.b16 %v1482
        %v1503 = vunpack.c.l.b16 %v1483
        %v1504 = vunpack.c.l.b16 %v1484
        %v1505 = vpack.c.b16 %v1498, %v1497
        %v1506 = vpack.c.b16 %v1500, %v1499
        %v1507 = vpack.c.b16 %v1502, %v1501
        %v1508 = vpack.c.b16 %v1504, %v1503
        %vm1513 = vcmask 523264
        %v1515 = vsel %vm1513, %v1476, 0
        %1517 = vmatpush.bf16.msra.mxu0 0
        %1518 = vmatpush.bf16.msra.mxu0 0
        %1519 = vmatpush.bf16.msra.mxu0 0
        %1520 = vmatpush.bf16.msra.mxu0 0
        %1521 = vmatpush.bf16.msra.mxu0 %v1508
        %1522 = vmatpush.bf16.msra.mxu0 %v1507
        %1523 = vmatpush.bf16.msra.mxu0 %v1506
        %1524 = vmatpush.bf16.msra.mxu0 %v1505
        %1525 = vmatmul.bf16.gmra.mxu0 %v1515
        %v1526 = vpop.f32.mrf.mxu0
        %v1527 = vadd.f32 %v1487, %v1526
        %v1528 = vpop.f32.mrf.mxu0
        %1529 = vdwg.mxu0
        %v1530 = vadd.f32 %v1437, %v1527
        %v1531 = vld [vmem:[%s937] sm:$0x1]
        %v1532 = vld [vmem:[%s805] sm:$0x1]
        %v1533 = vsel %vm1046, %v1530, 0.0
        %1534 = vadd.xlane.f32.xlu0 %v1533
        %v1535 = vpop.xlane.xlu0 %1534
        %v1536 = vmul.f32 %v1535, %v1410
        %v1537 = vsub.f32 %v1530, %v1536
        %v1538 = vmul.f32 %v1537, %v1537
        %v1539 = vsel %vm1046, %v1538, 0.0
        %1540 = vadd.xlane.f32.xlu0 %v1539
        %v1541 = vpop.xlane.xlu0 %1540
        %v1542 = vmul.f32 %v1541, %v1410
        %v1543 = vadd.f32 %v1542, 1e-05
        %v1544 = vrsqrt.pop %v1543
        %v1545 = vmul.f32 %v1544, %v1543
        %v1546 = vmul.f32 %v1545, %v1544
        %v1547 = vmul.f32 0.5, %v1546
        %v1548 = vsub.f32 1.5, %v1547
        %v1549 = vmul.f32 %v1544, %v1548
        %vm1550 = vweird.f32 %v1543
        %vm1551 = vweird.f32 %v1544
        %vm1552 = vmor %vm1550, %vm1551
        %v1553 = vsel %vm1552, %v1544, %v1549
        %v1554 = vmul.f32 %v1537, %v1553
        %v1556 = vperm.slane %v1531, 0
        %v1558 = vmul.f32 %v1554, %v1556
        %v1560 = vperm.slane %v1532, 0
        %v1562 = vadd.f32 %v1558, %v1560
        %1563 = vst.msk [vmem:[#allocation2] sm:$0xff] %vm1046, %v1562
        %p1564 = scmp.eq.s32.totalorder %s48, 1
        // Predicated region
        $region133: #{encoder_forward.1} parent=91 // pred_check
          %p1565 = pneg %p1564
        $region134: #{encoder_forward.1} parent=91 // pred_check_branch
          %1567 = sbr.rel (%p1565) target = $region136
        $region135: #{encoder_forward.1} parent=91 // pred_region
          %1568 = vst.msk [vmem:[%s907] sm:$0xff] %vm1046, %v1562
        $region136: #{encoder_forward.1} parent=91 // pred_fallthru
          _
        %s1569 = sand.u32 %s506, 1
        %s1570 = scalar_lea.sflag [#allocation5], %s1569
        %s1571 = sand.u32 %s506, 1
        %s1572 = smul.addr %s1571, 8
        %s1573 = scalar_lea.vmem [#allocation18], %s1572
        // Predicated region
        $region137: #{encoder_forward.1} parent=91 // pred_check
          %p1574 = pneg %p516
        $region138: #{encoder_forward.1} parent=91 // pred_check_branch
          %1576 = sbr.rel (%p1574) target = $region140
        $region139: #{encoder_forward.1} parent=91 // pred_region
          %1578 = vsyncadd %s1570, 0
          %s1579 = smul.addr %s47, 8
          %s1580 = scalar_lea.hbm %s18, %s1579
          %s1582 = sshll.u32 %s1573, 4
          %s1583 = int_to_ptr.vmem [resolvable:$true] %s1582
          %s1584 = sshll.u32 %s1580, 4
          %s1585 = int_to_ptr.hbm [resolvable:$true] %s1584
          %1587 = dma.vmem_to_hbm [thread:$0]  %s1583, 128, %s1585, %s1570
        $region140: #{encoder_forward.1} parent=91 // pred_fallthru
          _
      $region92: #{encoder_forward.1} parent=5 // pred_fallthru
        _
      %p1588 = scmp.le.s32.totalorder 2, %s38
      // Predicated region
      $region141: #{encoder_forward.1} parent=5 // pred_check
        %p1589 = pneg %p1588
      $region142: #{encoder_forward.1} parent=5 // pred_check_branch
        %1591 = sbr.rel (%p1589) target = $region144
      $region143: #{encoder_forward.1} parent=5 // pred_region
        %s1592 = ssub.s32 %s38, 2
        // Predicated region
        $region145: #{encoder_forward.1} parent=143 // pred_check
          %p1593 = pneg %p522
        $region146: #{encoder_forward.1} parent=143 // pred_check_branch
          %1595 = sbr.rel (%p1593) target = $region148
        $region147: #{encoder_forward.1} parent=143 // pred_region
          %s1596 = sand.u32 %s507, 1
          %s1597 = scalar_lea.sflag [#allocation5], %s1596
          %s1598 = sand.u32 %s507, 1
          %s1599 = smul.addr %s1598, 8
          %s1600 = scalar_lea.vmem [#allocation18], %s1599
          %1602 = dma.done %s1597, 128
        $region148: #{encoder_forward.1} parent=143 // pred_fallthru
          _
      $region144: #{encoder_forward.1} parent=5 // pred_fallthru
        _
    $region6: #{encoder_forward.1} parent=1 // loop_footer
      %s42 = sadd.s32 1, %s38
    $region7: #{encoder_forward.1} parent=1 // loop_footer_branch
      %37 = sbr.rel target = $region3
    $region8: #{encoder_forward.1} parent=1 // loop_exit
      _
    %1603 = vsyncpa [#allocation4], 1
    %s1604 = scalar_lea.sflag [#allocation4], 1
    %1605 = vsyncpa %s1604, 1
    %1606 = vsyncpa [#allocation7], 1
    %1607 = vsyncpa [#allocation10], 1
    %s1608 = scalar_lea.sflag [#allocation10], 1
    %1609 = vsyncpa %s1608, 1
    %1610 = vsyncpa [#allocation13], 1
    %s1611 = scalar_lea.sflag [#allocation13], 1
    %1612 = vsyncpa %s1611, 1
    %1613 = vsyncpa [#allocation16], 1
    %s1614 = scalar_lea.sflag [#allocation16], 1
    %1615 = vsyncpa %s1614, 1
    %1616 = vsyncpa [#allocation5], 1
    %s1617 = scalar_lea.sflag [#allocation5], 1
    %1618 = vsyncpa %s1617, 1

</llo_original>
